<compile_context>
chip_gen: v7x
topology: tpu7x:2x2x1
jax: 0.10.0
libtpu: 0.0.40
codegen_flags: <defaults>
</compile_context>

<pallas_src>
import functools

import numpy as np
import jax
import jax.numpy as jnp
from jax.experimental import pallas as pl
from jax.experimental.pallas import tpu as pltpu


# ----------------------------------------------------------------------------
# Fused CATENN kernel: GRU over T steps + mask + gather-at-actionNum, one call.
# ----------------------------------------------------------------------------
def _catenn_gru_kernel(x_ref, mask_ref, an_ref, wih_ref, whh_ref, bi_ref,
                       bhn_ref, out_ref, *, B, T, H):
    # [3] Hoisted input projection: one (T*B,E)@(E,3H) MXU matmul for all steps.
    xproj = jnp.dot(x_ref[...], wih_ref[...],
                    preferred_element_type=jnp.float32) + bi_ref[...]   # (T*B,3H)
    whh = whh_ref[...]                                                  # (H, 3H)
    bhn = bhn_ref[...]                                                  # (1, H)
    an = an_ref[...]                                                    # (B, 1) i32

    # [5] mask[b, actionNum[b]] computed once, vectorized (no scalar gathers).
    t_iota = jax.lax.broadcasted_iota(jnp.int32, (B, T), 1)
    mask_at_an = jnp.sum(jnp.where(t_iota == an, mask_ref[...], 0.0),
                         axis=1, keepdims=True)                         # (B, 1)

    h = jnp.zeros((B, H), jnp.float32)
    acc = jnp.zeros((B, H), jnp.float32)

    # [1] Fully unrolled static time loop inside one kernel invocation.
    for t in range(T):
        xp = xproj[t * B:(t + 1) * B, :]                                # (B, 3H)
        # [2] Fused r/z/n recurrent matmul: one (B,H)@(H,3H) dot per step.
        hp = jnp.dot(h, whh, preferred_element_type=jnp.float32)        # (B, 3H)
        r = jax.nn.sigmoid(xp[:, :H] + hp[:, :H])
        z = jax.nn.sigmoid(xp[:, H:2 * H] + hp[:, H:2 * H])
        n = jnp.tanh(xp[:, 2 * H:] + r * (hp[:, 2 * H:] + bhn))
        # [9] h' = n + z*(h - n)  ==  (1-z)*n + z*h, one fewer VPU op.
        h = n + z * (h - n)
        # [5] In-kernel select of the hidden state where t == actionNum[b].
        acc = acc + jnp.where(an == t, h, 0.0)

    # Single (B,H) writeback (no per-step (1,B,H) masked stores).
    out_ref[...] = acc * mask_at_an


def catenn_forward(params, cate_short_batch, action_mask_short_batch,
                   actionNum_short_batch, train_test_flag="test"):
    """Pallas implementation of CATENN.forward.

    Returns seq_cate_short_input: (B, cate_hidden_size) float32.
    """
    # TODO(synk): nn.GRU dropout is a no-op for num_layers=1 and dropout_input=0,
    # so the forward here carries no dropout; train_test_flag is accepted but unused.
    del train_test_flag
    B, T = cate_short_batch.shape
    H = params["w_hh"].shape[0]

    # [4] Embedding lookup emits rows already in time-major order (row = t*B+b),
    # fusing the "transpose" into the gather index -> no activation transpose op.
    idx_tb = jnp.transpose(cate_short_batch, (1, 0)).reshape(-1)        # (T*B,)
    x2 = jnp.take(params["cate_emb"], idx_tb, axis=0)                   # (T*B, E)

    mask = action_mask_short_batch.astype(jnp.float32)                  # (B, T)
    an = actionNum_short_batch.astype(jnp.int32).reshape(B, 1)          # (B, 1)

    kernel = functools.partial(_catenn_gru_kernel, B=B, T=T, H=H)
    vmem = pl.BlockSpec(memory_space=pltpu.MemorySpace.VMEM)
    # TODO(synk): on v6e/v7x the matmuls could run in bf16 (f32 accumulate) for
    # ~2x MXU throughput at production sizes; kept f32 here to match PyTorch.
    return pl.pallas_call(
        kernel,
        out_shape=jax.ShapeDtypeStruct((B, H), jnp.float32),
        in_specs=[vmem] * 7,
        out_specs=vmem,
    )(x2, mask, an, params["w_ih"], params["w_hh"], params["b_i"],
      params["b_hn"])


# ----------------------------------------------------------------------------
# Parameter init (synthetic, deterministic) in kernel-friendly fused layout.
# ----------------------------------------------------------------------------
def init_catenn_params(key, cate_input_size, cate_embedding_dim,
                       cate_hidden_size):
    E, H = cate_embedding_dim, cate_hidden_size
    k_emb, k_wih, k_whh, k_bih, k_bhh = jax.random.split(key, 5)
    s = 1.0 / np.sqrt(H)
    emb = 0.1 * jax.random.normal(k_emb, (cate_input_size, E), jnp.float32)
    # Fused gate weights, column blocks ordered [r | z | n] (x @ W layout).
    w_ih = jax.random.uniform(k_wih, (E, 3 * H), jnp.float32, -s, s)
    w_hh = jax.random.uniform(k_whh, (H, 3 * H), jnp.float32, -s, s)
    b_ih = jax.random.uniform(k_bih, (3 * H,), jnp.float32, -s, s)
    b_hh = jax.random.uniform(k_bhh, (3 * H,), jnp.float32, -s, s)
    # [9] Pre-combine r/z biases; the hidden n-gate bias stays separate because
    # it sits inside r * (h Whn + bhn).
    b_i = b_ih.at[:2 * H].add(b_hh[:2 * H]).reshape(1, 3 * H)
    b_hn = b_hh[2 * H:].reshape(1, H)
    # (m_cate_h2o weight is shared with the embedding and unused in forward.)
    return {"cate_emb": emb, "w_ih": w_ih, "w_hh": w_hh, "b_i": b_i,
            "b_hn": b_hn}


# ----------------------------------------------------------------------------
# Pure-JAX reference (scan GRU) for a correctness check.
# ----------------------------------------------------------------------------
def catenn_forward_ref(params, cate_short_batch, action_mask_short_batch,
                       actionNum_short_batch):
    B, T = cate_short_batch.shape
    H = params["w_hh"].shape[0]
    hi = jax.lax.Precision.HIGHEST
    emb = jnp.take(params["cate_emb"], cate_short_batch, axis=0)        # (B,T,E)

    def step(h, x_t):
        xp = jnp.dot(x_t, params["w_ih"], precision=hi) + params["b_i"]
        hp = jnp.dot(h, params["w_hh"], precision=hi)
        r = jax.nn.sigmoid(xp[:, :H] + hp[:, :H])
        z = jax.nn.sigmoid(xp[:, H:2 * H] + hp[:, H:2 * H])
        n = jnp.tanh(xp[:, 2 * H:] + r * (hp[:, 2 * H:] + params["b_hn"]))
        h_new = (1.0 - z) * n + z * h
        return h_new, h_new

    h0 = jnp.zeros((B, H), jnp.float32)
    _, hs = jax.lax.scan(step, h0, jnp.transpose(emb, (1, 0, 2)))       # (T,B,H)
    out_all = (jnp.transpose(hs, (1, 0, 2))
               * action_mask_short_batch[..., None].astype(jnp.float32))
    return out_all[jnp.arange(B), actionNum_short_batch]


# ----------------------------------------------------------------------------
if __name__ == "__main__":
    B, T = 4, 8                       # batch, short sequence length
    cate_input_size = 16              # == cate_output_size (shared embedding)
    cate_embedding_dim = cate_hidden_size = 32

    key = jax.random.PRNGKey(0)
    pkey, dkey = jax.random.split(key)
    params = init_catenn_params(pkey, cate_input_size, cate_embedding_dim,
                                cate_hidden_size)

    d0, d1, d2 = jax.random.split(dkey, 3)
    cate_short_batch = jax.random.randint(d0, (B, T), 0, cate_input_size,
                                          dtype=jnp.int32)
    action_mask_short_batch = jax.random.bernoulli(d1, 0.8,
                                                   (B, T)).astype(jnp.float32)
    actionNum_short_batch = jax.random.randint(d2, (B,), 0, T, dtype=jnp.int32)

    fwd = jax.jit(catenn_forward, static_argnames=("train_test_flag",))
    seq_cate_short_input = fwd(params, cate_short_batch,
                               action_mask_short_batch, actionNum_short_batch,
                               train_test_flag="test")
    jax.block_until_ready(seq_cate_short_input)
    assert seq_cate_short_input.shape == (B, cate_hidden_size)

    ref = catenn_forward_ref(params, cate_short_batch,
                             action_mask_short_batch, actionNum_short_batch)
    np.testing.assert_allclose(np.asarray(seq_cate_short_input),
                               np.asarray(ref), rtol=2e-3, atol=2e-3)
    print("KERNEL_OK")
</pallas_src>

<mosaic_0001>
module attributes {stable_mosaic.version = 11 : i64} {
  func.func @_catenn_gru_kernel(%arg0: memref<32x32xf32, #tpu.memory_space<vmem>>, %arg1: memref<4x8xf32, #tpu.memory_space<vmem>>, %arg2: memref<4x1xi32, #tpu.memory_space<vmem>>, %arg3: memref<32x96xf32, #tpu.memory_space<vmem>>, %arg4: memref<32x96xf32, #tpu.memory_space<vmem>>, %arg5: memref<1x96xf32, #tpu.memory_space<vmem>>, %arg6: memref<1x32xf32, #tpu.memory_space<vmem>>, %arg7: memref<4x32xf32, #tpu.memory_space<vmem>>) attributes {dimension_semantics = [], scalar_prefetch = 0 : i64, scratch_operands = 0 : i64, tpu.core_type = #tpu.core_type<tc>} {
    %c0 = arith.constant 0 : index
    %c0_0 = arith.constant 0 : index
    %0 = vector.load %arg0[%c0, %c0_0] : memref<32x32xf32, #tpu.memory_space<vmem>>, vector<32x32xf32>
    %c0_1 = arith.constant 0 : index
    %c0_2 = arith.constant 0 : index
    %1 = vector.load %arg3[%c0_1, %c0_2] : memref<32x96xf32, #tpu.memory_space<vmem>>, vector<32x96xf32>
    %cst = arith.constant dense<0.000000e+00> : vector<32x96xf32>
    %2 = tpu.matmul %0, %1, %cst {dimension_numbers = #tpu.dot_dimension_numbers<[1], [0], [0], [1], [0, 0, 1, 1], [], []>} : vector<32x32xf32>, vector<32x96xf32>, vector<32x96xf32> -> vector<32x96xf32>
    %c0_3 = arith.constant 0 : index
    %c0_4 = arith.constant 0 : index
    %3 = vector.load %arg5[%c0_3, %c0_4] : memref<1x96xf32, #tpu.memory_space<vmem>>, vector<1x96xf32>
    %4 = vector.broadcast %3 : vector<1x96xf32> to vector<32x96xf32>
    %5 = arith.addf %2, %4 : vector<32x96xf32>
    %c0_5 = arith.constant 0 : index
    %c0_6 = arith.constant 0 : index
    %6 = vector.load %arg4[%c0_5, %c0_6] : memref<32x96xf32, #tpu.memory_space<vmem>>, vector<32x96xf32>
    %c0_7 = arith.constant 0 : index
    %c0_8 = arith.constant 0 : index
    %7 = vector.load %arg6[%c0_7, %c0_8] : memref<1x32xf32, #tpu.memory_space<vmem>>, vector<1x32xf32>
    %c0_9 = arith.constant 0 : index
    %c0_10 = arith.constant 0 : index
    %8 = vector.load %arg2[%c0_9, %c0_10] : memref<4x1xi32, #tpu.memory_space<vmem>>, vector<4x1xi32>
    %9 = tpu.iota {dimensions = array<i32: 1>} : vector<4x8xi32>
    %10 = vector.broadcast %8 : vector<4x1xi32> to vector<4x8xi32>
    %11 = arith.cmpi eq, %9, %10 : vector<4x8xi32>
    %c0_11 = arith.constant 0 : index
    %c0_12 = arith.constant 0 : index
    %12 = vector.load %arg1[%c0_11, %c0_12] : memref<4x8xf32, #tpu.memory_space<vmem>>, vector<4x8xf32>
    %cst_13 = arith.constant 0.000000e+00 : f32
    %13 = vector.broadcast %cst_13 : f32 to vector<4x8xf32>
    %14 = arith.select %11, %12, %13 : vector<4x8xi1>, vector<4x8xf32>
    %cst_14 = arith.constant dense<0.000000e+00> : vector<4xf32>
    %15 = vector.multi_reduction <add>, %14, %cst_14 [1] : vector<4x8xf32> to vector<4xf32>
    %16 = vector.shape_cast %15 : vector<4xf32> to vector<4x1xf32>
    %cst_15 = arith.constant 0.000000e+00 : f32
    %17 = vector.broadcast %cst_15 : f32 to vector<4x32xf32>
    %cst_16 = arith.constant 0.000000e+00 : f32
    %18 = vector.broadcast %cst_16 : f32 to vector<4x32xf32>
    %19 = vector.extract_strided_slice %5 {offsets = [0, 0], sizes = [4, 96], strides = [1, 1]} : vector<32x96xf32> to vector<4x96xf32>
    %cst_17 = arith.constant dense<0.000000e+00> : vector<4x96xf32>
    %20 = tpu.matmul %17, %6, %cst_17 {dimension_numbers = #tpu.dot_dimension_numbers<[1], [0], [0], [1], [0, 0, 1, 1], [], []>} : vector<4x32xf32>, vector<32x96xf32>, vector<4x96xf32> -> vector<4x96xf32>
    %21 = vector.extract_strided_slice %19 {offsets = [0, 0], sizes = [4, 32], strides = [1, 1]} : vector<4x96xf32> to vector<4x32xf32>
    %22 = vector.extract_strided_slice %20 {offsets = [0, 0], sizes = [4, 32], strides = [1, 1]} : vector<4x96xf32> to vector<4x32xf32>
    %23 = arith.addf %21, %22 : vector<4x32xf32>
    %24 = arith.negf %23 : vector<4x32xf32>
    %25 = math.exp %24 : vector<4x32xf32>
    %cst_18 = arith.constant 1.000000e+00 : f32
    %26 = vector.broadcast %cst_18 : f32 to vector<4x32xf32>
    %27 = arith.addf %26, %25 : vector<4x32xf32>
    %28 = arith.divf %26, %27 : vector<4x32xf32>
    %29 = vector.extract_strided_slice %19 {offsets = [0, 32], sizes = [4, 32], strides = [1, 1]} : vector<4x96xf32> to vector<4x32xf32>
    %30 = vector.extract_strided_slice %20 {offsets = [0, 32], sizes = [4, 32], strides = [1, 1]} : vector<4x96xf32> to vector<4x32xf32>
    %31 = arith.addf %29, %30 : vector<4x32xf32>
    %32 = arith.negf %31 : vector<4x32xf32>
    %33 = math.exp %32 : vector<4x32xf32>
    %cst_19 = arith.constant 1.000000e+00 : f32
    %34 = vector.broadcast %cst_19 : f32 to vector<4x32xf32>
    %35 = arith.addf %34, %33 : vector<4x32xf32>
    %36 = arith.divf %34, %35 : vector<4x32xf32>
    %37 = vector.extract_strided_slice %19 {offsets = [0, 64], sizes = [4, 32], strides = [1, 1]} : vector<4x96xf32> to vector<4x32xf32>
    %38 = vector.extract_strided_slice %20 {offsets = [0, 64], sizes = [4, 32], strides = [1, 1]} : vector<4x96xf32> to vector<4x32xf32>
    %39 = vector.broadcast %7 : vector<1x32xf32> to vector<4x32xf32>
    %40 = arith.addf %38, %39 : vector<4x32xf32>
    %41 = arith.mulf %28, %40 : vector<4x32xf32>
    %42 = arith.addf %37, %41 : vector<4x32xf32>
    %43 = math.tanh %42 : vector<4x32xf32>
    %44 = arith.subf %17, %43 : vector<4x32xf32>
    %45 = arith.mulf %36, %44 : vector<4x32xf32>
    %46 = arith.addf %43, %45 : vector<4x32xf32>
    %c0_i32 = arith.constant 0 : i32
    %47 = vector.broadcast %c0_i32 : i32 to vector<4x1xi32>
    %48 = arith.cmpi eq, %8, %47 : vector<4x1xi32>
    %cst_20 = arith.constant 0.000000e+00 : f32
    %49 = vector.shape_cast %48 : vector<4x1xi1> to vector<4x1xi1>
    %50 = vector.broadcast %49 : vector<4x1xi1> to vector<4x32xi1>
    %51 = vector.broadcast %cst_20 : f32 to vector<4x32xf32>
    %52 = arith.select %50, %46, %51 : vector<4x32xi1>, vector<4x32xf32>
    %53 = arith.addf %18, %52 : vector<4x32xf32>
    %54 = vector.extract_strided_slice %5 {offsets = [4, 0], sizes = [4, 96], strides = [1, 1]} : vector<32x96xf32> to vector<4x96xf32>
    %cst_21 = arith.constant dense<0.000000e+00> : vector<4x96xf32>
    %55 = tpu.matmul %46, %6, %cst_21 {dimension_numbers = #tpu.dot_dimension_numbers<[1], [0], [0], [1], [0, 0, 1, 1], [], []>} : vector<4x32xf32>, vector<32x96xf32>, vector<4x96xf32> -> vector<4x96xf32>
    %56 = vector.extract_strided_slice %54 {offsets = [0, 0], sizes = [4, 32], strides = [1, 1]} : vector<4x96xf32> to vector<4x32xf32>
    %57 = vector.extract_strided_slice %55 {offsets = [0, 0], sizes = [4, 32], strides = [1, 1]} : vector<4x96xf32> to vector<4x32xf32>
    %58 = arith.addf %56, %57 : vector<4x32xf32>
    %59 = arith.negf %58 : vector<4x32xf32>
    %60 = math.exp %59 : vector<4x32xf32>
    %cst_22 = arith.constant 1.000000e+00 : f32
    %61 = vector.broadcast %cst_22 : f32 to vector<4x32xf32>
    %62 = arith.addf %61, %60 : vector<4x32xf32>
    %63 = arith.divf %61, %62 : vector<4x32xf32>
    %64 = vector.extract_strided_slice %54 {offsets = [0, 32], sizes = [4, 32], strides = [1, 1]} : vector<4x96xf32> to vector<4x32xf32>
    %65 = vector.extract_strided_slice %55 {offsets = [0, 32], sizes = [4, 32], strides = [1, 1]} : vector<4x96xf32> to vector<4x32xf32>
    %66 = arith.addf %64, %65 : vector<4x32xf32>
    %67 = arith.negf %66 : vector<4x32xf32>
    %68 = math.exp %67 : vector<4x32xf32>
    %cst_23 = arith.constant 1.000000e+00 : f32
    %69 = vector.broadcast %cst_23 : f32 to vector<4x32xf32>
    %70 = arith.addf %69, %68 : vector<4x32xf32>
    %71 = arith.divf %69, %70 : vector<4x32xf32>
    %72 = vector.extract_strided_slice %54 {offsets = [0, 64], sizes = [4, 32], strides = [1, 1]} : vector<4x96xf32> to vector<4x32xf32>
    %73 = vector.extract_strided_slice %55 {offsets = [0, 64], sizes = [4, 32], strides = [1, 1]} : vector<4x96xf32> to vector<4x32xf32>
    %74 = vector.broadcast %7 : vector<1x32xf32> to vector<4x32xf32>
    %75 = arith.addf %73, %74 : vector<4x32xf32>
    %76 = arith.mulf %63, %75 : vector<4x32xf32>
    %77 = arith.addf %72, %76 : vector<4x32xf32>
    %78 = math.tanh %77 : vector<4x32xf32>
    %79 = arith.subf %46, %78 : vector<4x32xf32>
    %80 = arith.mulf %71, %79 : vector<4x32xf32>
    %81 = arith.addf %78, %80 : vector<4x32xf32>
    %c1_i32 = arith.constant 1 : i32
    %82 = vector.broadcast %c1_i32 : i32 to vector<4x1xi32>
    %83 = arith.cmpi eq, %8, %82 : vector<4x1xi32>
    %cst_24 = arith.constant 0.000000e+00 : f32
    %84 = vector.shape_cast %83 : vector<4x1xi1> to vector<4x1xi1>
    %85 = vector.broadcast %84 : vector<4x1xi1> to vector<4x32xi1>
    %86 = vector.broadcast %cst_24 : f32 to vector<4x32xf32>
    %87 = arith.select %85, %81, %86 : vector<4x32xi1>, vector<4x32xf32>
    %88 = arith.addf %53, %87 : vector<4x32xf32>
    %89 = vector.extract_strided_slice %5 {offsets = [8, 0], sizes = [4, 96], strides = [1, 1]} : vector<32x96xf32> to vector<4x96xf32>
    %cst_25 = arith.constant dense<0.000000e+00> : vector<4x96xf32>
    %90 = tpu.matmul %81, %6, %cst_25 {dimension_numbers = #tpu.dot_dimension_numbers<[1], [0], [0], [1], [0, 0, 1, 1], [], []>} : vector<4x32xf32>, vector<32x96xf32>, vector<4x96xf32> -> vector<4x96xf32>
    %91 = vector.extract_strided_slice %89 {offsets = [0, 0], sizes = [4, 32], strides = [1, 1]} : vector<4x96xf32> to vector<4x32xf32>
    %92 = vector.extract_strided_slice %90 {offsets = [0, 0], sizes = [4, 32], strides = [1, 1]} : vector<4x96xf32> to vector<4x32xf32>
    %93 = arith.addf %91, %92 : vector<4x32xf32>
    %94 = arith.negf %93 : vector<4x32xf32>
    %95 = math.exp %94 : vector<4x32xf32>
    %cst_26 = arith.constant 1.000000e+00 : f32
    %96 = vector.broadcast %cst_26 : f32 to vector<4x32xf32>
    %97 = arith.addf %96, %95 : vector<4x32xf32>
    %98 = arith.divf %96, %97 : vector<4x32xf32>
    %99 = vector.extract_strided_slice %89 {offsets = [0, 32], sizes = [4, 32], strides = [1, 1]} : vector<4x96xf32> to vector<4x32xf32>
    %100 = vector.extract_strided_slice %90 {offsets = [0, 32], sizes = [4, 32], strides = [1, 1]} : vector<4x96xf32> to vector<4x32xf32>
    %101 = arith.addf %99, %100 : vector<4x32xf32>
    %102 = arith.negf %101 : vector<4x32xf32>
    %103 = math.exp %102 : vector<4x32xf32>
    %cst_27 = arith.constant 1.000000e+00 : f32
    %104 = vector.broadcast %cst_27 : f32 to vector<4x32xf32>
    %105 = arith.addf %104, %103 : vector<4x32xf32>
    %106 = arith.divf %104, %105 : vector<4x32xf32>
    %107 = vector.extract_strided_slice %89 {offsets = [0, 64], sizes = [4, 32], strides = [1, 1]} : vector<4x96xf32> to vector<4x32xf32>
    %108 = vector.extract_strided_slice %90 {offsets = [0, 64], sizes = [4, 32], strides = [1, 1]} : vector<4x96xf32> to vector<4x32xf32>
    %109 = vector.broadcast %7 : vector<1x32xf32> to vector<4x32xf32>
    %110 = arith.addf %108, %109 : vector<4x32xf32>
    %111 = arith.mulf %98, %110 : vector<4x32xf32>
    %112 = arith.addf %107, %111 : vector<4x32xf32>
    %113 = math.tanh %112 : vector<4x32xf32>
    %114 = arith.subf %81, %113 : vector<4x32xf32>
    %115 = arith.mulf %106, %114 : vector<4x32xf32>
    %116 = arith.addf %113, %115 : vector<4x32xf32>
    %c2_i32 = arith.constant 2 : i32
    %117 = vector.broadcast %c2_i32 : i32 to vector<4x1xi32>
    %118 = arith.cmpi eq, %8, %117 : vector<4x1xi32>
    %cst_28 = arith.constant 0.000000e+00 : f32
    %119 = vector.shape_cast %118 : vector<4x1xi1> to vector<4x1xi1>
    %120 = vector.broadcast %119 : vector<4x1xi1> to vector<4x32xi1>
    %121 = vector.broadcast %cst_28 : f32 to vector<4x32xf32>
    %122 = arith.select %120, %116, %121 : vector<4x32xi1>, vector<4x32xf32>
    %123 = arith.addf %88, %122 : vector<4x32xf32>
    %124 = vector.extract_strided_slice %5 {offsets = [12, 0], sizes = [4, 96], strides = [1, 1]} : vector<32x96xf32> to vector<4x96xf32>
    %cst_29 = arith.constant dense<0.000000e+00> : vector<4x96xf32>
    %125 = tpu.matmul %116, %6, %cst_29 {dimension_numbers = #tpu.dot_dimension_numbers<[1], [0], [0], [1], [0, 0, 1, 1], [], []>} : vector<4x32xf32>, vector<32x96xf32>, vector<4x96xf32> -> vector<4x96xf32>
    %126 = vector.extract_strided_slice %124 {offsets = [0, 0], sizes = [4, 32], strides = [1, 1]} : vector<4x96xf32> to vector<4x32xf32>
    %127 = vector.extract_strided_slice %125 {offsets = [0, 0], sizes = [4, 32], strides = [1, 1]} : vector<4x96xf32> to vector<4x32xf32>
    %128 = arith.addf %126, %127 : vector<4x32xf32>
    %129 = arith.negf %128 : vector<4x32xf32>
    %130 = math.exp %129 : vector<4x32xf32>
    %cst_30 = arith.constant 1.000000e+00 : f32
    %131 = vector.broadcast %cst_30 : f32 to vector<4x32xf32>
    %132 = arith.addf %131, %130 : vector<4x32xf32>
    %133 = arith.divf %131, %132 : vector<4x32xf32>
    %134 = vector.extract_strided_slice %124 {offsets = [0, 32], sizes = [4, 32], strides = [1, 1]} : vector<4x96xf32> to vector<4x32xf32>
    %135 = vector.extract_strided_slice %125 {offsets = [0, 32], sizes = [4, 32], strides = [1, 1]} : vector<4x96xf32> to vector<4x32xf32>
    %136 = arith.addf %134, %135 : vector<4x32xf32>
    %137 = arith.negf %136 : vector<4x32xf32>
    %138 = math.exp %137 : vector<4x32xf32>
    %cst_31 = arith.constant 1.000000e+00 : f32
    %139 = vector.broadcast %cst_31 : f32 to vector<4x32xf32>
    %140 = arith.addf %139, %138 : vector<4x32xf32>
    %141 = arith.divf %139, %140 : vector<4x32xf32>
    %142 = vector.extract_strided_slice %124 {offsets = [0, 64], sizes = [4, 32], strides = [1, 1]} : vector<4x96xf32> to vector<4x32xf32>
    %143 = vector.extract_strided_slice %125 {offsets = [0, 64], sizes = [4, 32], strides = [1, 1]} : vector<4x96xf32> to vector<4x32xf32>
    %144 = vector.broadcast %7 : vector<1x32xf32> to vector<4x32xf32>
    %145 = arith.addf %143, %144 : vector<4x32xf32>
    %146 = arith.mulf %133, %145 : vector<4x32xf32>
    %147 = arith.addf %142, %146 : vector<4x32xf32>
    %148 = math.tanh %147 : vector<4x32xf32>
    %149 = arith.subf %116, %148 : vector<4x32xf32>
    %150 = arith.mulf %141, %149 : vector<4x32xf32>
    %151 = arith.addf %148, %150 : vector<4x32xf32>
    %c3_i32 = arith.constant 3 : i32
    %152 = vector.broadcast %c3_i32 : i32 to vector<4x1xi32>
    %153 = arith.cmpi eq, %8, %152 : vector<4x1xi32>
    %cst_32 = arith.constant 0.000000e+00 : f32
    %154 = vector.shape_cast %153 : vector<4x1xi1> to vector<4x1xi1>
    %155 = vector.broadcast %154 : vector<4x1xi1> to vector<4x32xi1>
    %156 = vector.broadcast %cst_32 : f32 to vector<4x32xf32>
    %157 = arith.select %155, %151, %156 : vector<4x32xi1>, vector<4x32xf32>
    %158 = arith.addf %123, %157 : vector<4x32xf32>
    %159 = vector.extract_strided_slice %5 {offsets = [16, 0], sizes = [4, 96], strides = [1, 1]} : vector<32x96xf32> to vector<4x96xf32>
    %cst_33 = arith.constant dense<0.000000e+00> : vector<4x96xf32>
    %160 = tpu.matmul %151, %6, %cst_33 {dimension_numbers = #tpu.dot_dimension_numbers<[1], [0], [0], [1], [0, 0, 1, 1], [], []>} : vector<4x32xf32>, vector<32x96xf32>, vector<4x96xf32> -> vector<4x96xf32>
    %161 = vector.extract_strided_slice %159 {offsets = [0, 0], sizes = [4, 32], strides = [1, 1]} : vector<4x96xf32> to vector<4x32xf32>
    %162 = vector.extract_strided_slice %160 {offsets = [0, 0], sizes = [4, 32], strides = [1, 1]} : vector<4x96xf32> to vector<4x32xf32>
    %163 = arith.addf %161, %162 : vector<4x32xf32>
    %164 = arith.negf %163 : vector<4x32xf32>
    %165 = math.exp %164 : vector<4x32xf32>
    %cst_34 = arith.constant 1.000000e+00 : f32
    %166 = vector.broadcast %cst_34 : f32 to vector<4x32xf32>
    %167 = arith.addf %166, %165 : vector<4x32xf32>
    %168 = arith.divf %166, %167 : vector<4x32xf32>
    %169 = vector.extract_strided_slice %159 {offsets = [0, 32], sizes = [4, 32], strides = [1, 1]} : vector<4x96xf32> to vector<4x32xf32>
    %170 = vector.extract_strided_slice %160 {offsets = [0, 32], sizes = [4, 32], strides = [1, 1]} : vector<4x96xf32> to vector<4x32xf32>
    %171 = arith.addf %169, %170 : vector<4x32xf32>
    %172 = arith.negf %171 : vector<4x32xf32>
    %173 = math.exp %172 : vector<4x32xf32>
    %cst_35 = arith.constant 1.000000e+00 : f32
    %174 = vector.broadcast %cst_35 : f32 to vector<4x32xf32>
    %175 = arith.addf %174, %173 : vector<4x32xf32>
    %176 = arith.divf %174, %175 : vector<4x32xf32>
    %177 = vector.extract_strided_slice %159 {offsets = [0, 64], sizes = [4, 32], strides = [1, 1]} : vector<4x96xf32> to vector<4x32xf32>
    %178 = vector.extract_strided_slice %160 {offsets = [0, 64], sizes = [4, 32], strides = [1, 1]} : vector<4x96xf32> to vector<4x32xf32>
    %179 = vector.broadcast %7 : vector<1x32xf32> to vector<4x32xf32>
    %180 = arith.addf %178, %179 : vector<4x32xf32>
    %181 = arith.mulf %168, %180 : vector<4x32xf32>
    %182 = arith.addf %177, %181 : vector<4x32xf32>
    %183 = math.tanh %182 : vector<4x32xf32>
    %184 = arith.subf %151, %183 : vector<4x32xf32>
    %185 = arith.mulf %176, %184 : vector<4x32xf32>
    %186 = arith.addf %183, %185 : vector<4x32xf32>
    %c4_i32 = arith.constant 4 : i32
    %187 = vector.broadcast %c4_i32 : i32 to vector<4x1xi32>
    %188 = arith.cmpi eq, %8, %187 : vector<4x1xi32>
    %cst_36 = arith.constant 0.000000e+00 : f32
    %189 = vector.shape_cast %188 : vector<4x1xi1> to vector<4x1xi1>
    %190 = vector.broadcast %189 : vector<4x1xi1> to vector<4x32xi1>
    %191 = vector.broadcast %cst_36 : f32 to vector<4x32xf32>
    %192 = arith.select %190, %186, %191 : vector<4x32xi1>, vector<4x32xf32>
    %193 = arith.addf %158, %192 : vector<4x32xf32>
    %194 = vector.extract_strided_slice %5 {offsets = [20, 0], sizes = [4, 96], strides = [1, 1]} : vector<32x96xf32> to vector<4x96xf32>
    %cst_37 = arith.constant dense<0.000000e+00> : vector<4x96xf32>
    %195 = tpu.matmul %186, %6, %cst_37 {dimension_numbers = #tpu.dot_dimension_numbers<[1], [0], [0], [1], [0, 0, 1, 1], [], []>} : vector<4x32xf32>, vector<32x96xf32>, vector<4x96xf32> -> vector<4x96xf32>
    %196 = vector.extract_strided_slice %194 {offsets = [0, 0], sizes = [4, 32], strides = [1, 1]} : vector<4x96xf32> to vector<4x32xf32>
    %197 = vector.extract_strided_slice %195 {offsets = [0, 0], sizes = [4, 32], strides = [1, 1]} : vector<4x96xf32> to vector<4x32xf32>
    %198 = arith.addf %196, %197 : vector<4x32xf32>
    %199 = arith.negf %198 : vector<4x32xf32>
    %200 = math.exp %199 : vector<4x32xf32>
    %cst_38 = arith.constant 1.000000e+00 : f32
    %201 = vector.broadcast %cst_38 : f32 to vector<4x32xf32>
    %202 = arith.addf %201, %200 : vector<4x32xf32>
    %203 = arith.divf %201, %202 : vector<4x32xf32>
    %204 = vector.extract_strided_slice %194 {offsets = [0, 32], sizes = [4, 32], strides = [1, 1]} : vector<4x96xf32> to vector<4x32xf32>
    %205 = vector.extract_strided_slice %195 {offsets = [0, 32], sizes = [4, 32], strides = [1, 1]} : vector<4x96xf32> to vector<4x32xf32>
    %206 = arith.addf %204, %205 : vector<4x32xf32>
    %207 = arith.negf %206 : vector<4x32xf32>
    %208 = math.exp %207 : vector<4x32xf32>
    %cst_39 = arith.constant 1.000000e+00 : f32
    %209 = vector.broadcast %cst_39 : f32 to vector<4x32xf32>
    %210 = arith.addf %209, %208 : vector<4x32xf32>
    %211 = arith.divf %209, %210 : vector<4x32xf32>
    %212 = vector.extract_strided_slice %194 {offsets = [0, 64], sizes = [4, 32], strides = [1, 1]} : vector<4x96xf32> to vector<4x32xf32>
    %213 = vector.extract_strided_slice %195 {offsets = [0, 64], sizes = [4, 32], strides = [1, 1]} : vector<4x96xf32> to vector<4x32xf32>
    %214 = vector.broadcast %7 : vector<1x32xf32> to vector<4x32xf32>
    %215 = arith.addf %213, %214 : vector<4x32xf32>
    %216 = arith.mulf %203, %215 : vector<4x32xf32>
    %217 = arith.addf %212, %216 : vector<4x32xf32>
    %218 = math.tanh %217 : vector<4x32xf32>
    %219 = arith.subf %186, %218 : vector<4x32xf32>
    %220 = arith.mulf %211, %219 : vector<4x32xf32>
    %221 = arith.addf %218, %220 : vector<4x32xf32>
    %c5_i32 = arith.constant 5 : i32
    %222 = vector.broadcast %c5_i32 : i32 to vector<4x1xi32>
    %223 = arith.cmpi eq, %8, %222 : vector<4x1xi32>
    %cst_40 = arith.constant 0.000000e+00 : f32
    %224 = vector.shape_cast %223 : vector<4x1xi1> to vector<4x1xi1>
    %225 = vector.broadcast %224 : vector<4x1xi1> to vector<4x32xi1>
    %226 = vector.broadcast %cst_40 : f32 to vector<4x32xf32>
    %227 = arith.select %225, %221, %226 : vector<4x32xi1>, vector<4x32xf32>
    %228 = arith.addf %193, %227 : vector<4x32xf32>
    %229 = vector.extract_strided_slice %5 {offsets = [24, 0], sizes = [4, 96], strides = [1, 1]} : vector<32x96xf32> to vector<4x96xf32>
    %cst_41 = arith.constant dense<0.000000e+00> : vector<4x96xf32>
    %230 = tpu.matmul %221, %6, %cst_41 {dimension_numbers = #tpu.dot_dimension_numbers<[1], [0], [0], [1], [0, 0, 1, 1], [], []>} : vector<4x32xf32>, vector<32x96xf32>, vector<4x96xf32> -> vector<4x96xf32>
    %231 = vector.extract_strided_slice %229 {offsets = [0, 0], sizes = [4, 32], strides = [1, 1]} : vector<4x96xf32> to vector<4x32xf32>
    %232 = vector.extract_strided_slice %230 {offsets = [0, 0], sizes = [4, 32], strides = [1, 1]} : vector<4x96xf32> to vector<4x32xf32>
    %233 = arith.addf %231, %232 : vector<4x32xf32>
    %234 = arith.negf %233 : vector<4x32xf32>
    %235 = math.exp %234 : vector<4x32xf32>
    %cst_42 = arith.constant 1.000000e+00 : f32
    %236 = vector.broadcast %cst_42 : f32 to vector<4x32xf32>
    %237 = arith.addf %236, %235 : vector<4x32xf32>
    %238 = arith.divf %236, %237 : vector<4x32xf32>
    %239 = vector.extract_strided_slice %229 {offsets = [0, 32], sizes = [4, 32], strides = [1, 1]} : vector<4x96xf32> to vector<4x32xf32>
    %240 = vector.extract_strided_slice %230 {offsets = [0, 32], sizes = [4, 32], strides = [1, 1]} : vector<4x96xf32> to vector<4x32xf32>
    %241 = arith.addf %239, %240 : vector<4x32xf32>
    %242 = arith.negf %241 : vector<4x32xf32>
    %243 = math.exp %242 : vector<4x32xf32>
    %cst_43 = arith.constant 1.000000e+00 : f32
    %244 = vector.broadcast %cst_43 : f32 to vector<4x32xf32>
    %245 = arith.addf %244, %243 : vector<4x32xf32>
    %246 = arith.divf %244, %245 : vector<4x32xf32>
    %247 = vector.extract_strided_slice %229 {offsets = [0, 64], sizes = [4, 32], strides = [1, 1]} : vector<4x96xf32> to vector<4x32xf32>
    %248 = vector.extract_strided_slice %230 {offsets = [0, 64], sizes = [4, 32], strides = [1, 1]} : vector<4x96xf32> to vector<4x32xf32>
    %249 = vector.broadcast %7 : vector<1x32xf32> to vector<4x32xf32>
    %250 = arith.addf %248, %249 : vector<4x32xf32>
    %251 = arith.mulf %238, %250 : vector<4x32xf32>
    %252 = arith.addf %247, %251 : vector<4x32xf32>
    %253 = math.tanh %252 : vector<4x32xf32>
    %254 = arith.subf %221, %253 : vector<4x32xf32>
    %255 = arith.mulf %246, %254 : vector<4x32xf32>
    %256 = arith.addf %253, %255 : vector<4x32xf32>
    %c6_i32 = arith.constant 6 : i32
    %257 = vector.broadcast %c6_i32 : i32 to vector<4x1xi32>
    %258 = arith.cmpi eq, %8, %257 : vector<4x1xi32>
    %cst_44 = arith.constant 0.000000e+00 : f32
    %259 = vector.shape_cast %258 : vector<4x1xi1> to vector<4x1xi1>
    %260 = vector.broadcast %259 : vector<4x1xi1> to vector<4x32xi1>
    %261 = vector.broadcast %cst_44 : f32 to vector<4x32xf32>
    %262 = arith.select %260, %256, %261 : vector<4x32xi1>, vector<4x32xf32>
    %263 = arith.addf %228, %262 : vector<4x32xf32>
    %264 = vector.extract_strided_slice %5 {offsets = [28, 0], sizes = [4, 96], strides = [1, 1]} : vector<32x96xf32> to vector<4x96xf32>
    %cst_45 = arith.constant dense<0.000000e+00> : vector<4x96xf32>
    %265 = tpu.matmul %256, %6, %cst_45 {dimension_numbers = #tpu.dot_dimension_numbers<[1], [0], [0], [1], [0, 0, 1, 1], [], []>} : vector<4x32xf32>, vector<32x96xf32>, vector<4x96xf32> -> vector<4x96xf32>
    %266 = vector.extract_strided_slice %264 {offsets = [0, 0], sizes = [4, 32], strides = [1, 1]} : vector<4x96xf32> to vector<4x32xf32>
    %267 = vector.extract_strided_slice %265 {offsets = [0, 0], sizes = [4, 32], strides = [1, 1]} : vector<4x96xf32> to vector<4x32xf32>
    %268 = arith.addf %266, %267 : vector<4x32xf32>
    %269 = arith.negf %268 : vector<4x32xf32>
    %270 = math.exp %269 : vector<4x32xf32>
    %cst_46 = arith.constant 1.000000e+00 : f32
    %271 = vector.broadcast %cst_46 : f32 to vector<4x32xf32>
    %272 = arith.addf %271, %270 : vector<4x32xf32>
    %273 = arith.divf %271, %272 : vector<4x32xf32>
    %274 = vector.extract_strided_slice %264 {offsets = [0, 32], sizes = [4, 32], strides = [1, 1]} : vector<4x96xf32> to vector<4x32xf32>
    %275 = vector.extract_strided_slice %265 {offsets = [0, 32], sizes = [4, 32], strides = [1, 1]} : vector<4x96xf32> to vector<4x32xf32>
    %276 = arith.addf %274, %275 : vector<4x32xf32>
    %277 = arith.negf %276 : vector<4x32xf32>
    %278 = math.exp %277 : vector<4x32xf32>
    %cst_47 = arith.constant 1.000000e+00 : f32
    %279 = vector.broadcast %cst_47 : f32 to vector<4x32xf32>
    %280 = arith.addf %279, %278 : vector<4x32xf32>
    %281 = arith.divf %279, %280 : vector<4x32xf32>
    %282 = vector.extract_strided_slice %264 {offsets = [0, 64], sizes = [4, 32], strides = [1, 1]} : vector<4x96xf32> to vector<4x32xf32>
    %283 = vector.extract_strided_slice %265 {offsets = [0, 64], sizes = [4, 32], strides = [1, 1]} : vector<4x96xf32> to vector<4x32xf32>
    %284 = vector.broadcast %7 : vector<1x32xf32> to vector<4x32xf32>
    %285 = arith.addf %283, %284 : vector<4x32xf32>
    %286 = arith.mulf %273, %285 : vector<4x32xf32>
    %287 = arith.addf %282, %286 : vector<4x32xf32>
    %288 = math.tanh %287 : vector<4x32xf32>
    %289 = arith.subf %256, %288 : vector<4x32xf32>
    %290 = arith.mulf %281, %289 : vector<4x32xf32>
    %291 = arith.addf %288, %290 : vector<4x32xf32>
    %c7_i32 = arith.constant 7 : i32
    %292 = vector.broadcast %c7_i32 : i32 to vector<4x1xi32>
    %293 = arith.cmpi eq, %8, %292 : vector<4x1xi32>
    %cst_48 = arith.constant 0.000000e+00 : f32
    %294 = vector.shape_cast %293 : vector<4x1xi1> to vector<4x1xi1>
    %295 = vector.broadcast %294 : vector<4x1xi1> to vector<4x32xi1>
    %296 = vector.broadcast %cst_48 : f32 to vector<4x32xf32>
    %297 = arith.select %295, %291, %296 : vector<4x32xi1>, vector<4x32xf32>
    %298 = arith.addf %263, %297 : vector<4x32xf32>
    %299 = vector.broadcast %16 : vector<4x1xf32> to vector<4x32xf32>
    %300 = arith.mulf %298, %299 : vector<4x32xf32>
    %c0_49 = arith.constant 0 : index
    %c0_50 = arith.constant 0 : index
    %301 = vector.load %arg7[%c0_49, %c0_50] : memref<4x32xf32, #tpu.memory_space<vmem>>, vector<4x32xf32>
    tpu.vector_store %arg7[%c0_49, %c0_50], %300 {strides = array<i32>} : memref<4x32xf32, #tpu.memory_space<vmem>>, vector<4x32xf32>,
    return
  }
}

</mosaic_0001>

<llo_original>
// kernel: catenn_forward.1
$region0: #{catenn_forward.1}
  #allocation0 [shape = 'u32[]', space=smem, size = 0x4, offset = 0x4, fixed_abs, tag = 'smem constant byte address 0x4 - core index']
  #allocation1 [shape = 'u32[144,128]{1,0:T(1,128)}', space=vmem, size = 0x12000, scoped, tag = 'internal scratch']
  %s0 = inlined_call_operand.vmem [shape: f32[32,32], index: 0, kind: input, shape index: {}]
  %s1 = inlined_call_operand.vmem [shape: f32[4,8], index: 1, kind: input, shape index: {}]
  %s2 = inlined_call_operand.vmem [shape: s32[4,1], index: 2, kind: input, shape index: {}]
  %s3 = inlined_call_operand.vmem [shape: f32[32,96], index: 3, kind: input, shape index: {}]
  %s4 = inlined_call_operand.vmem [shape: f32[32,96], index: 4, kind: input, shape index: {}]
  %s5 = inlined_call_operand.vmem [shape: f32[1,96], index: 5, kind: input, shape index: {}]
  %s6 = inlined_call_operand.vmem [shape: f32[1,32], index: 6, kind: input, shape index: {}]
  %s7 = inlined_call_operand.hbm [shape: f32[4,32], index: 7, kind: output, shape index: {}]
  %s8 = sld [smem:[#allocation0]]
  $region38: #{catenn_forward.1} parent=0
    _
  %s10 = ssub.s32 1, %s8
  %s11 = scalar_select 0, %s10, %s8
  $region1: #{catenn_forward.1} parent=0
    #allocation2 [shape = 'u8[2048]{0}', space=vmem, size = 0x800, scoped, tag = 'output window, operand 0, single buffered']
    #allocation3 [shape = 's32[1]{0}', space=sflag, size = 0x4, scoped, tag = 'scoped memory for catenn_forward.1']
    %12 = vsyncpa [#allocation3], 0
    // Predicated region
    $region2: #{catenn_forward.1} parent=1 // pred_check
      _
    $region3: #{catenn_forward.1} parent=1 // pred_check_branch
      %14 = sbr.rel (0) target = $region5
    $region4: #{catenn_forward.1} parent=1 // pred_region
      _
    $region5: #{catenn_forward.1} parent=1 // pred_fallthru
      _
    // Predicated region
    $region6: #{catenn_forward.1} parent=1 // pred_check
      _
    $region7: #{catenn_forward.1} parent=1 // pred_check_branch
      %16 = sbr.rel (0) target = $region9
    $region8: #{catenn_forward.1} parent=1 // pred_region
      _
    $region9: #{catenn_forward.1} parent=1 // pred_fallthru
      _
    // Predicated region
    $region10: #{catenn_forward.1} parent=1 // pred_check
      _
    $region11: #{catenn_forward.1} parent=1 // pred_check_branch
      %18 = sbr.rel (0) target = $region13
    $region12: #{catenn_forward.1} parent=1 // pred_region
      _
    $region13: #{catenn_forward.1} parent=1 // pred_fallthru
      _
    // Predicated region
    $region14: #{catenn_forward.1} parent=1 // pred_check
      _
    $region15: #{catenn_forward.1} parent=1 // pred_check_branch
      %20 = sbr.rel (0) target = $region17
    $region16: #{catenn_forward.1} parent=1 // pred_region
      _
    $region17: #{catenn_forward.1} parent=1 // pred_fallthru
      _
    // Predicated region
    $region18: #{catenn_forward.1} parent=1 // pred_check
      _
    $region19: #{catenn_forward.1} parent=1 // pred_check_branch
      %22 = sbr.rel (0) target = $region21
    $region20: #{catenn_forward.1} parent=1 // pred_region
      _
    $region21: #{catenn_forward.1} parent=1 // pred_fallthru
      _
    // Predicated region
    $region22: #{catenn_forward.1} parent=1 // pred_check
      _
    $region23: #{catenn_forward.1} parent=1 // pred_check_branch
      %24 = sbr.rel (0) target = $region25
    $region24: #{catenn_forward.1} parent=1 // pred_region
      _
    $region25: #{catenn_forward.1} parent=1 // pred_fallthru
      _
    // Predicated region
    $region26: #{catenn_forward.1} parent=1 // pred_check
      _
    $region27: #{catenn_forward.1} parent=1 // pred_check_branch
      %26 = sbr.rel (0) target = $region29
    $region28: #{catenn_forward.1} parent=1 // pred_region
      _
    $region29: #{catenn_forward.1} parent=1 // pred_fallthru
      _
    %v27 = vld [vmem:[%s0] sm:$0xff]
    %v28 = vld [vmem:[%s0 + $0x8] sm:$0xff]
    %v29 = vld [vmem:[%s0 + $0x10] sm:$0xff]
    %v30 = vld [vmem:[%s0 + $0x18] sm:$0xff]
    %v31 = vld [vmem:[%s3] sm:$0xff]
    %v32 = vld [vmem:[%s3 + $0x8] sm:$0xff]
    %v33 = vld [vmem:[%s3 + $0x10] sm:$0xff]
    %v34 = vld [vmem:[%s3 + $0x18] sm:$0xff]
    %v35 = vld [vmem:[%s5] sm:$0x1]
    %v37 = vlaneseq
    %v38 = vshrl.u32 %v37, 7
    %v39 = vsub.s32 0, %v38
    %v40 = vrot.slane %v35, %v39
    %vm42 = vcmask 261120
    %v44 = vsel %vm42, %v27, 0
    %v47 = vsel %vm42, %v28, 0
    %v50 = vsel %vm42, %v29, 0
    %v53 = vsel %vm42, %v30, 0
    %55 = vmatprep.subr.mxu0 0.0
    %56 = vmatpush1.msra.mxu0 %v31
    %57 = vmatprep.subr.mxu0 0.0
    %58 = vmatpush1.msra.mxu0 %v32
    %59 = vmatprep.subr.mxu0 0.0
    %60 = vmatpush1.msra.mxu0 %v33
    %61 = vmatprep.subr.mxu0 0.0
    %62 = vmatpush1.msra.mxu0 %v34
    %63 = vmatprep.subr.mxu0 0.0
    %64 = vmatpush1.msra.mxu0 0.0
    %65 = vmatprep.subr.mxu0 0.0
    %66 = vmatpush1.msra.mxu0 0.0
    %67 = vmatprep.subr.mxu0 0.0
    %68 = vmatpush1.msra.mxu0 0.0
    %69 = vmatprep.subr.mxu0 0.0
    %70 = vmatpush1.msra.mxu0 0.0
    %71 = vmatprep.subr.mxu0 0.0
    %72 = vmatpush1.msra.mxu0 0.0
    %73 = vmatprep.subr.mxu0 0.0
    %74 = vmatpush1.msra.mxu0 0.0
    %75 = vmatprep.subr.mxu0 0.0
    %76 = vmatpush1.msra.mxu0 0.0
    %77 = vmatprep.subr.mxu0 0.0
    %78 = vmatpush1.msra.mxu0 0.0
    %79 = vmatprep.subr.mxu0 0.0
    %80 = vmatpush1.msra.mxu0 0.0
    %81 = vmatprep.subr.mxu0 0.0
    %82 = vmatpush1.msra.mxu0 0.0
    %83 = vmatprep.subr.mxu0 0.0
    %84 = vmatpush1.msra.mxu0 0.0
    %85 = vmatprep.subr.mxu0 0.0
    %86 = vmatpush1.msra.mxu0 0.0
    %87 = vmatprep.subr.mxu0 0.0
    %88 = vmatpush1.msra.mxu0 0.0
    %89 = vmatprep.subr.mxu0 0.0
    %90 = vmatpush1.msra.mxu0 0.0
    %91 = vmatprep.subr.mxu0 0.0
    %92 = vmatpush1.msra.mxu0 0.0
    %93 = vmatprep.subr.mxu0 0.0
    %94 = vmatpush1.msra.mxu0 0.0
    %95 = vmatprep.subr.mxu0 0.0
    %96 = vmatpush1.msra.mxu0 0.0
    %97 = vmatprep.subr.mxu0 0.0
    %98 = vmatpush1.msra.mxu0 0.0
    %99 = vmatprep.subr.mxu0 0.0
    %100 = vmatpush1.msra.mxu0 0.0
    %101 = vmatprep.subr.mxu0 0.0
    %102 = vmatpush1.msra.mxu0 0.0
    %103 = vmatprep.subr.mxu0 0.0
    %104 = vmatpush1.msra.mxu0 0.0
    %105 = vmatprep.subr.mxu0 0.0
    %106 = vmatpush1.msra.mxu0 0.0
    %107 = vmatprep.subr.mxu0 0.0
    %108 = vmatpush1.msra.mxu0 0.0
    %109 = vmatprep.subr.mxu0 0.0
    %110 = vmatpush1.msra.mxu0 0.0
    %111 = vmatprep.subr.mxu0 0.0
    %112 = vmatpush1.msra.mxu0 0.0
    %113 = vmatprep.subr.mxu0 0.0
    %114 = vmatpush1.msra.mxu0 0.0
    %115 = vmatprep.subr.mxu0 0.0
    %116 = vmatpush1.msra.mxu0 0.0
    %117 = vmatprep.subr.mxu0 0.0
    %118 = vmatpush1.msra.mxu0 0.0
    %119 = vmatprep.mubr.f32.mxu0 0.0
    %120 = vmatmul.mubr.f32.gmra.mrb[0].mxu0 %v44
    %v121 = vpop.f32.mrb[0].mxu0
    %v122 = vadd.f32 %v40, %v121
    %v123 = vpop.f32.mrb[0].mxu0
    %124 = vmatprep.mubr.f32.mxu0 0.0
    %125 = vmatmul.mubr.f32.gmra.mrb[0].mxu0 %v47
    %v126 = vpop.f32.mrb[0].mxu0
    %v127 = vadd.f32 %v40, %v126
    %v128 = vpop.f32.mrb[0].mxu0
    %129 = vmatprep.mubr.f32.mxu0 0.0
    %130 = vmatmul.mubr.f32.gmra.mrb[0].mxu0 %v50
    %v131 = vpop.f32.mrb[0].mxu0
    %v132 = vadd.f32 %v40, %v131
    %v133 = vpop.f32.mrb[0].mxu0
    %134 = vmatprep.mubr.f32.mxu0 0.0
    %135 = vmatmul.mubr.f32.gmra.mrb[0].mxu0 %v53
    %v136 = vpop.f32.mrb[0].mxu0
    %v137 = vadd.f32 %v40, %v136
    %v138 = vpop.f32.mrb[0].mxu0
    %139 = vdwg.mxu0
    %v140 = vld [vmem:[%s4] sm:$0xff]
    %v141 = vld [vmem:[%s4 + $0x8] sm:$0xff]
    %v142 = vld [vmem:[%s4 + $0x10] sm:$0xff]
    %v143 = vld [vmem:[%s4 + $0x18] sm:$0xff]
    %v144 = vld [vmem:[%s6] sm:$0x1]
    %v145 = vld [vmem:[%s2] sm:$0xf]
    %v146 = vlaneseq
    %v147 = vand.u32 %v146, 127
    %148 = vset.pattern.permute.xlu0 0
    %149 = vperm.xlu0 %148, %v145
    %v150 = vpop.permute.xlu0 %149
    %vm151 = vcmp.eq.s32.totalorder %v147, %v150
    %v152 = vld [vmem:[%s1] sm:$0xf]
    %v153 = vsel %vm151, %v152, 0.0
    %vm154 = vcmask 60416
    %v155 = vsel %vm154, %v153, 0.0
    %156 = vadd.xlane.f32.xlu0 %v155
    %v157 = vpop.xlane.xlu0 %156
    %v159 = vsel %vm42, 0.0, 0
    %161 = vmatprep.subr.mxu0 0.0
    %162 = vmatpush1.msra.mxu0 %v140
    %163 = vmatprep.subr.mxu0 0.0
    %164 = vmatpush1.msra.mxu0 %v141
    %165 = vmatprep.subr.mxu0 0.0
    %166 = vmatpush1.msra.mxu0 %v142
    %167 = vmatprep.subr.mxu0 0.0
    %168 = vmatpush1.msra.mxu0 %v143
    %169 = vmatprep.subr.mxu0 0.0
    %170 = vmatpush1.msra.mxu0 0.0
    %171 = vmatprep.subr.mxu0 0.0
    %172 = vmatpush1.msra.mxu0 0.0
    %173 = vmatprep.subr.mxu0 0.0
    %174 = vmatpush1.msra.mxu0 0.0
    %175 = vmatprep.subr.mxu0 0.0
    %176 = vmatpush1.msra.mxu0 0.0
    %177 = vmatprep.subr.mxu0 0.0
    %178 = vmatpush1.msra.mxu0 0.0
    %179 = vmatprep.subr.mxu0 0.0
    %180 = vmatpush1.msra.mxu0 0.0
    %181 = vmatprep.subr.mxu0 0.0
    %182 = vmatpush1.msra.mxu0 0.0
    %183 = vmatprep.subr.mxu0 0.0
    %184 = vmatpush1.msra.mxu0 0.0
    %185 = vmatprep.subr.mxu0 0.0
    %186 = vmatpush1.msra.mxu0 0.0
    %187 = vmatprep.subr.mxu0 0.0
    %188 = vmatpush1.msra.mxu0 0.0
    %189 = vmatprep.subr.mxu0 0.0
    %190 = vmatpush1.msra.mxu0 0.0
    %191 = vmatprep.subr.mxu0 0.0
    %192 = vmatpush1.msra.mxu0 0.0
    %193 = vmatprep.subr.mxu0 0.0
    %194 = vmatpush1.msra.mxu0 0.0
    %195 = vmatprep.subr.mxu0 0.0
    %196 = vmatpush1.msra.mxu0 0.0
    %197 = vmatprep.subr.mxu0 0.0
    %198 = vmatpush1.msra.mxu0 0.0
    %199 = vmatprep.subr.mxu0 0.0
    %200 = vmatpush1.msra.mxu0 0.0
    %201 = vmatprep.subr.mxu0 0.0
    %202 = vmatpush1.msra.mxu0 0.0
    %203 = vmatprep.subr.mxu0 0.0
    %204 = vmatpush1.msra.mxu0 0.0
    %205 = vmatprep.subr.mxu0 0.0
    %206 = vmatpush1.msra.mxu0 0.0
    %207 = vmatprep.subr.mxu0 0.0
    %208 = vmatpush1.msra.mxu0 0.0
    %209 = vmatprep.subr.mxu0 0.0
    %210 = vmatpush1.msra.mxu0 0.0
    %211 = vmatprep.subr.mxu0 0.0
    %212 = vmatpush1.msra.mxu0 0.0
    %213 = vmatprep.subr.mxu0 0.0
    %214 = vmatpush1.msra.mxu0 0.0
    %215 = vmatprep.subr.mxu0 0.0
    %216 = vmatpush1.msra.mxu0 0.0
    %217 = vmatprep.subr.mxu0 0.0
    %218 = vmatpush1.msra.mxu0 0.0
    %219 = vmatprep.subr.mxu0 0.0
    %220 = vmatpush1.msra.mxu0 0.0
    %221 = vmatprep.subr.mxu0 0.0
    %222 = vmatpush1.msra.mxu0 0.0
    %223 = vmatprep.subr.mxu0 0.0
    %224 = vmatpush1.msra.mxu0 0.0
    %225 = vmatprep.mubr.f32.mxu0 0.0
    %226 = vmatmul.mubr.f32.gmra.mrb[0].mxu0 %v159
    %v227 = vpop.f32.mrb[0].mxu0
    %v228 = vadd.f32 0.0, %v227
    %v229 = vpop.f32.mrb[0].mxu0
    %230 = vdwg.mxu0
    %v231 = vadd.f32 %v122, %v228
    %v232 = vxor.u32 %v231, 2147483648
    %v233 = vmul.f32 %v232, 1.442695
    %v234 = vpow.pop %v233
    %v235 = vadd.f32 %v234, 1.0
    %v236 = vrcp.pop %v235
    %v237 = vmul.f32 1.0, %v236
    %v239 = vlaneseq
    %v240 = vshrl.u32 %v239, 7
    %v241 = vsub.s32 0, %v240
    %v242 = vrot.slane %v144, %v241
    %243 = vrot.lane.b32.xlu0 %v242, 64
    %v244 = vpop.permute.xlu0 %243
    %v246 = vadd.f32 %v228, %v244
    %248 = vrot.lane.b32.xlu0 %v246, 64
    %v249 = vpop.permute.xlu0 %248
    %v251 = vmul.f32 %v237, %v249
    %253 = vrot.lane.b32.xlu0 %v251, 64
    %v254 = vpop.permute.xlu0 %253
    %v256 = vadd.f32 %v122, %v254
    %v257 = vtanh.pop %v256
    %v258 = vsub.f32 0.0, %v257
    %260 = vrot.lane.b32.xlu0 %v258, 96
    %v261 = vpop.permute.xlu0 %260
    %v263 = vmul.f32 %v237, %v261
    %265 = vrot.lane.b32.xlu0 %v263, 32
    %v266 = vpop.permute.xlu0 %265
    %v268 = vadd.f32 %v257, %v266
    %vm269 = vcmp.eq.s32.totalorder %v145, 0
    %v270 = vsel %vm269, 1, 0
    %271 = vset.pattern.permute.xlu0 0
    %272 = vperm.xlu0 %271, %v270
    %v273 = vpop.permute.xlu0 %272
    %vm274 = vcmp.eq.s32.totalorder %v273, 1
    %v275 = vsel %vm274, %v268, 0.0
    %v276 = vadd.f32 %v275, 0.0
    %278 = vrot.lane.b32.xlu0 %v268, 64
    %v279 = vpop.permute.xlu0 %278
    %v280 = vsel %vm42, %v279, 0
    %282 = vmatprep.subr.mxu0 0.0
    %283 = vmatpush1.msra.mxu0 %v140
    %284 = vmatprep.subr.mxu0 0.0
    %285 = vmatpush1.msra.mxu0 %v141
    %286 = vmatprep.subr.mxu0 0.0
    %287 = vmatpush1.msra.mxu0 %v142
    %288 = vmatprep.subr.mxu0 0.0
    %289 = vmatpush1.msra.mxu0 %v143
    %290 = vmatprep.subr.mxu0 0.0
    %291 = vmatpush1.msra.mxu0 0.0
    %292 = vmatprep.subr.mxu0 0.0
    %293 = vmatpush1.msra.mxu0 0.0
    %294 = vmatprep.subr.mxu0 0.0
    %295 = vmatpush1.msra.mxu0 0.0
    %296 = vmatprep.subr.mxu0 0.0
    %297 = vmatpush1.msra.mxu0 0.0
    %298 = vmatprep.subr.mxu0 0.0
    %299 = vmatpush1.msra.mxu0 0.0
    %300 = vmatprep.subr.mxu0 0.0
    %301 = vmatpush1.msra.mxu0 0.0
    %302 = vmatprep.subr.mxu0 0.0
    %303 = vmatpush1.msra.mxu0 0.0
    %304 = vmatprep.subr.mxu0 0.0
    %305 = vmatpush1.msra.mxu0 0.0
    %306 = vmatprep.subr.mxu0 0.0
    %307 = vmatpush1.msra.mxu0 0.0
    %308 = vmatprep.subr.mxu0 0.0
    %309 = vmatpush1.msra.mxu0 0.0
    %310 = vmatprep.subr.mxu0 0.0
    %311 = vmatpush1.msra.mxu0 0.0
    %312 = vmatprep.subr.mxu0 0.0
    %313 = vmatpush1.msra.mxu0 0.0
    %314 = vmatprep.subr.mxu0 0.0
    %315 = vmatpush1.msra.mxu0 0.0
    %316 = vmatprep.subr.mxu0 0.0
    %317 = vmatpush1.msra.mxu0 0.0
    %318 = vmatprep.subr.mxu0 0.0
    %319 = vmatpush1.msra.mxu0 0.0
    %320 = vmatprep.subr.mxu0 0.0
    %321 = vmatpush1.msra.mxu0 0.0
    %322 = vmatprep.subr.mxu0 0.0
    %323 = vmatpush1.msra.mxu0 0.0
    %324 = vmatprep.subr.mxu0 0.0
    %325 = vmatpush1.msra.mxu0 0.0
    %326 = vmatprep.subr.mxu0 0.0
    %327 = vmatpush1.msra.mxu0 0.0
    %328 = vmatprep.subr.mxu0 0.0
    %329 = vmatpush1.msra.mxu0 0.0
    %330 = vmatprep.subr.mxu0 0.0
    %331 = vmatpush1.msra.mxu0 0.0
    %332 = vmatprep.subr.mxu0 0.0
    %333 = vmatpush1.msra.mxu0 0.0
    %334 = vmatprep.subr.mxu0 0.0
    %335 = vmatpush1.msra.mxu0 0.0
    %336 = vmatprep.subr.mxu0 0.0
    %337 = vmatpush1.msra.mxu0 0.0
    %338 = vmatprep.subr.mxu0 0.0
    %339 = vmatpush1.msra.mxu0 0.0
    %340 = vmatprep.subr.mxu0 0.0
    %341 = vmatpush1.msra.mxu0 0.0
    %342 = vmatprep.subr.mxu0 0.0
    %343 = vmatpush1.msra.mxu0 0.0
    %344 = vmatprep.subr.mxu0 0.0
    %345 = vmatpush1.msra.mxu0 0.0
    %346 = vmatprep.mubr.f32.mxu0 0.0
    %347 = vmatmul.mubr.f32.gmra.mrb[0].mxu0 %v280
    %v348 = vpop.f32.mrb[0].mxu0
    %v349 = vadd.f32 0.0, %v348
    %v350 = vpop.f32.mrb[0].mxu0
    %351 = vdwg.mxu0
    %v353 = vrot.slane %v349, 4
    %v355 = vadd.f32 %v122, %v353
    %v356 = vxor.u32 %v355, 2147483648
    %v357 = vmul.f32 %v356, 1.442695
    %v358 = vpow.pop %v357
    %v359 = vadd.f32 %v358, 1.0
    %v360 = vrcp.pop %v359
    %v361 = vmul.f32 1.0, %v360
    %v362 = vadd.f32 %v349, %v244
    %v364 = vrot.slane %v362, 4
    %365 = vrot.lane.b32.xlu0 %v364, 64
    %v366 = vpop.permute.xlu0 %365
    %v368 = vmul.f32 %v361, %v366
    %370 = vrot.lane.b32.xlu0 %v368, 64
    %v371 = vpop.permute.xlu0 %370
    %v373 = vadd.f32 %v122, %v371
    %v374 = vtanh.pop %v373
    %v376 = vrot.slane %v374, 4
    %v378 = vsub.f32 %v268, %v376
    %v380 = vrot.slane %v378, 4
    %381 = vrot.lane.b32.xlu0 %v380, 96
    %v382 = vpop.permute.xlu0 %381
    %v384 = vmul.f32 %v361, %v382
    %386 = vrot.lane.b32.xlu0 %v384, 32
    %v387 = vpop.permute.xlu0 %386
    %v389 = vadd.f32 %v374, %v387
    %vm390 = vcmp.eq.s32.totalorder %v145, 1
    %v391 = vsel %vm390, 1, 0
    %392 = vset.pattern.permute.xlu0 0
    %393 = vperm.xlu0 %392, %v391
    %v394 = vpop.permute.xlu0 %393
    %vm395 = vcmp.eq.s32.totalorder %v394, 1
    %v397 = vrot.slane %v389, 4
    %398 = vrot.lane.b32.xlu0 %v397, 64
    %v399 = vpop.permute.xlu0 %398
    %v401 = vsel %vm395, %v399, 0.0
    %403 = vrot.lane.b32.xlu0 %v401, 64
    %v404 = vpop.permute.xlu0 %403
    %v406 = vadd.f32 %v276, %v404
    %v407 = vsel %vm42, %v399, 0
    %409 = vmatprep.subr.mxu0 0.0
    %410 = vmatpush1.msra.mxu0 %v140
    %411 = vmatprep.subr.mxu0 0.0
    %412 = vmatpush1.msra.mxu0 %v141
    %413 = vmatprep.subr.mxu0 0.0
    %414 = vmatpush1.msra.mxu0 %v142
    %415 = vmatprep.subr.mxu0 0.0
    %416 = vmatpush1.msra.mxu0 %v143
    %417 = vmatprep.subr.mxu0 0.0
    %418 = vmatpush1.msra.mxu0 0.0
    %419 = vmatprep.subr.mxu0 0.0
    %420 = vmatpush1.msra.mxu0 0.0
    %421 = vmatprep.subr.mxu0 0.0
    %422 = vmatpush1.msra.mxu0 0.0
    %423 = vmatprep.subr.mxu0 0.0
    %424 = vmatpush1.msra.mxu0 0.0
    %425 = vmatprep.subr.mxu0 0.0
    %426 = vmatpush1.msra.mxu0 0.0
    %427 = vmatprep.subr.mxu0 0.0
    %428 = vmatpush1.msra.mxu0 0.0
    %429 = vmatprep.subr.mxu0 0.0
    %430 = vmatpush1.msra.mxu0 0.0
    %431 = vmatprep.subr.mxu0 0.0
    %432 = vmatpush1.msra.mxu0 0.0
    %433 = vmatprep.subr.mxu0 0.0
    %434 = vmatpush1.msra.mxu0 0.0
    %435 = vmatprep.subr.mxu0 0.0
    %436 = vmatpush1.msra.mxu0 0.0
    %437 = vmatprep.subr.mxu0 0.0
    %438 = vmatpush1.msra.mxu0 0.0
    %439 = vmatprep.subr.mxu0 0.0
    %440 = vmatpush1.msra.mxu0 0.0
    %441 = vmatprep.subr.mxu0 0.0
    %442 = vmatpush1.msra.mxu0 0.0
    %443 = vmatprep.subr.mxu0 0.0
    %444 = vmatpush1.msra.mxu0 0.0
    %445 = vmatprep.subr.mxu0 0.0
    %446 = vmatpush1.msra.mxu0 0.0
    %447 = vmatprep.subr.mxu0 0.0
    %448 = vmatpush1.msra.mxu0 0.0
    %449 = vmatprep.subr.mxu0 0.0
    %450 = vmatpush1.msra.mxu0 0.0
    %451 = vmatprep.subr.mxu0 0.0
    %452 = vmatpush1.msra.mxu0 0.0
    %453 = vmatprep.subr.mxu0 0.0
    %454 = vmatpush1.msra.mxu0 0.0
    %455 = vmatprep.subr.mxu0 0.0
    %456 = vmatpush1.msra.mxu0 0.0
    %457 = vmatprep.subr.mxu0 0.0
    %458 = vmatpush1.msra.mxu0 0.0
    %459 = vmatprep.subr.mxu0 0.0
    %460 = vmatpush1.msra.mxu0 0.0
    %461 = vmatprep.subr.mxu0 0.0
    %462 = vmatpush1.msra.mxu0 0.0
    %463 = vmatprep.subr.mxu0 0.0
    %464 = vmatpush1.msra.mxu0 0.0
    %465 = vmatprep.subr.mxu0 0.0
    %466 = vmatpush1.msra.mxu0 0.0
    %467 = vmatprep.subr.mxu0 0.0
    %468 = vmatpush1.msra.mxu0 0.0
    %469 = vmatprep.subr.mxu0 0.0
    %470 = vmatpush1.msra.mxu0 0.0
    %471 = vmatprep.subr.mxu0 0.0
    %472 = vmatpush1.msra.mxu0 0.0
    %473 = vmatprep.mubr.f32.mxu0 0.0
    %474 = vmatmul.mubr.f32.gmra.mrb[0].mxu0 %v407
    %v475 = vpop.f32.mrb[0].mxu0
    %v476 = vadd.f32 0.0, %v475
    %v477 = vpop.f32.mrb[0].mxu0
    %478 = vdwg.mxu0
    %v479 = vadd.f32 %v127, %v476
    %v480 = vxor.u32 %v479, 2147483648
    %v481 = vmul.f32 %v480, 1.442695
    %v482 = vpow.pop %v481
    %v483 = vadd.f32 %v482, 1.0
    %v484 = vrcp.pop %v483
    %v485 = vmul.f32 1.0, %v484
    %v486 = vadd.f32 %v476, %v244
    %488 = vrot.lane.b32.xlu0 %v486, 64
    %v489 = vpop.permute.xlu0 %488
    %v491 = vmul.f32 %v485, %v489
    %493 = vrot.lane.b32.xlu0 %v491, 64
    %v494 = vpop.permute.xlu0 %493
    %v496 = vadd.f32 %v127, %v494
    %v497 = vtanh.pop %v496
    %v499 = vrot.slane %v497, 4
    %v501 = vsub.f32 %v389, %v499
    %v503 = vrot.slane %v501, 4
    %504 = vrot.lane.b32.xlu0 %v503, 96
    %v505 = vpop.permute.xlu0 %504
    %v507 = vmul.f32 %v485, %v505
    %509 = vrot.lane.b32.xlu0 %v507, 32
    %v510 = vpop.permute.xlu0 %509
    %v512 = vadd.f32 %v497, %v510
    %vm513 = vcmp.eq.s32.totalorder %v145, 2
    %v514 = vsel %vm513, 1, 0
    %515 = vset.pattern.permute.xlu0 0
    %516 = vperm.xlu0 %515, %v514
    %v517 = vpop.permute.xlu0 %516
    %vm518 = vcmp.eq.s32.totalorder %v517, 1
    %v519 = vsel %vm518, %v512, 0.0
    %v520 = vadd.f32 %v406, %v519
    %522 = vrot.lane.b32.xlu0 %v512, 64
    %v523 = vpop.permute.xlu0 %522
    %v524 = vsel %vm42, %v523, 0
    %526 = vmatprep.subr.mxu0 0.0
    %527 = vmatpush1.msra.mxu0 %v140
    %528 = vmatprep.subr.mxu0 0.0
    %529 = vmatpush1.msra.mxu0 %v141
    %530 = vmatprep.subr.mxu0 0.0
    %531 = vmatpush1.msra.mxu0 %v142
    %532 = vmatprep.subr.mxu0 0.0
    %533 = vmatpush1.msra.mxu0 %v143
    %534 = vmatprep.subr.mxu0 0.0
    %535 = vmatpush1.msra.mxu0 0.0
    %536 = vmatprep.subr.mxu0 0.0
    %537 = vmatpush1.msra.mxu0 0.0
    %538 = vmatprep.subr.mxu0 0.0
    %539 = vmatpush1.msra.mxu0 0.0
    %540 = vmatprep.subr.mxu0 0.0
    %541 = vmatpush1.msra.mxu0 0.0
    %542 = vmatprep.subr.mxu0 0.0
    %543 = vmatpush1.msra.mxu0 0.0
    %544 = vmatprep.subr.mxu0 0.0
    %545 = vmatpush1.msra.mxu0 0.0
    %546 = vmatprep.subr.mxu0 0.0
    %547 = vmatpush1.msra.mxu0 0.0
    %548 = vmatprep.subr.mxu0 0.0
    %549 = vmatpush1.msra.mxu0 0.0
    %550 = vmatprep.subr.mxu0 0.0
    %551 = vmatpush1.msra.mxu0 0.0
    %552 = vmatprep.subr.mxu0 0.0
    %553 = vmatpush1.msra.mxu0 0.0
    %554 = vmatprep.subr.mxu0 0.0
    %555 = vmatpush1.msra.mxu0 0.0
    %556 = vmatprep.subr.mxu0 0.0
    %557 = vmatpush1.msra.mxu0 0.0
    %558 = vmatprep.subr.mxu0 0.0
    %559 = vmatpush1.msra.mxu0 0.0
    %560 = vmatprep.subr.mxu0 0.0
    %561 = vmatpush1.msra.mxu0 0.0
    %562 = vmatprep.subr.mxu0 0.0
    %563 = vmatpush1.msra.mxu0 0.0
    %564 = vmatprep.subr.mxu0 0.0
    %565 = vmatpush1.msra.mxu0 0.0
    %566 = vmatprep.subr.mxu0 0.0
    %567 = vmatpush1.msra.mxu0 0.0
    %568 = vmatprep.subr.mxu0 0.0
    %569 = vmatpush1.msra.mxu0 0.0
    %570 = vmatprep.subr.mxu0 0.0
    %571 = vmatpush1.msra.mxu0 0.0
    %572 = vmatprep.subr.mxu0 0.0
    %573 = vmatpush1.msra.mxu0 0.0
    %574 = vmatprep.subr.mxu0 0.0
    %575 = vmatpush1.msra.mxu0 0.0
    %576 = vmatprep.subr.mxu0 0.0
    %577 = vmatpush1.msra.mxu0 0.0
    %578 = vmatprep.subr.mxu0 0.0
    %579 = vmatpush1.msra.mxu0 0.0
    %580 = vmatprep.subr.mxu0 0.0
    %581 = vmatpush1.msra.mxu0 0.0
    %582 = vmatprep.subr.mxu0 0.0
    %583 = vmatpush1.msra.mxu0 0.0
    %584 = vmatprep.subr.mxu0 0.0
    %585 = vmatpush1.msra.mxu0 0.0
    %586 = vmatprep.subr.mxu0 0.0
    %587 = vmatpush1.msra.mxu0 0.0
    %588 = vmatprep.subr.mxu0 0.0
    %589 = vmatpush1.msra.mxu0 0.0
    %590 = vmatprep.mubr.f32.mxu0 0.0
    %591 = vmatmul.mubr.f32.gmra.mrb[0].mxu0 %v524
    %v592 = vpop.f32.mrb[0].mxu0
    %v593 = vadd.f32 0.0, %v592
    %v594 = vpop.f32.mrb[0].mxu0
    %595 = vdwg.mxu0
    %v597 = vrot.slane %v593, 4
    %v599 = vadd.f32 %v127, %v597
    %v600 = vxor.u32 %v599, 2147483648
    %v601 = vmul.f32 %v600, 1.442695
    %v602 = vpow.pop %v601
    %v603 = vadd.f32 %v602, 1.0
    %v604 = vrcp.pop %v603
    %v605 = vmul.f32 1.0, %v604
    %v606 = vadd.f32 %v593, %v244
    %v608 = vrot.slane %v606, 4
    %609 = vrot.lane.b32.xlu0 %v608, 64
    %v610 = vpop.permute.xlu0 %609
    %v612 = vmul.f32 %v605, %v610
    %614 = vrot.lane.b32.xlu0 %v612, 64
    %v615 = vpop.permute.xlu0 %614
    %v617 = vadd.f32 %v127, %v615
    %v618 = vtanh.pop %v617
    %v620 = vrot.slane %v618, 4
    %v622 = vsub.f32 %v512, %v620
    %v624 = vrot.slane %v622, 4
    %625 = vrot.lane.b32.xlu0 %v624, 96
    %v626 = vpop.permute.xlu0 %625
    %v628 = vmul.f32 %v605, %v626
    %630 = vrot.lane.b32.xlu0 %v628, 32
    %v631 = vpop.permute.xlu0 %630
    %v633 = vadd.f32 %v618, %v631
    %vm634 = vcmp.eq.s32.totalorder %v145, 3
    %v635 = vsel %vm634, 1, 0
    %636 = vset.pattern.permute.xlu0 0
    %637 = vperm.xlu0 %636, %v635
    %v638 = vpop.permute.xlu0 %637
    %vm639 = vcmp.eq.s32.totalorder %v638, 1
    %v641 = vrot.slane %v633, 4
    %642 = vrot.lane.b32.xlu0 %v641, 64
    %v643 = vpop.permute.xlu0 %642
    %v645 = vsel %vm639, %v643, 0.0
    %647 = vrot.lane.b32.xlu0 %v645, 64
    %v648 = vpop.permute.xlu0 %647
    %v650 = vadd.f32 %v520, %v648
    %v651 = vsel %vm42, %v643, 0
    %653 = vmatprep.subr.mxu0 0.0
    %654 = vmatpush1.msra.mxu0 %v140
    %655 = vmatprep.subr.mxu0 0.0
    %656 = vmatpush1.msra.mxu0 %v141
    %657 = vmatprep.subr.mxu0 0.0
    %658 = vmatpush1.msra.mxu0 %v142
    %659 = vmatprep.subr.mxu0 0.0
    %660 = vmatpush1.msra.mxu0 %v143
    %661 = vmatprep.subr.mxu0 0.0
    %662 = vmatpush1.msra.mxu0 0.0
    %663 = vmatprep.subr.mxu0 0.0
    %664 = vmatpush1.msra.mxu0 0.0
    %665 = vmatprep.subr.mxu0 0.0
    %666 = vmatpush1.msra.mxu0 0.0
    %667 = vmatprep.subr.mxu0 0.0
    %668 = vmatpush1.msra.mxu0 0.0
    %669 = vmatprep.subr.mxu0 0.0
    %670 = vmatpush1.msra.mxu0 0.0
    %671 = vmatprep.subr.mxu0 0.0
    %672 = vmatpush1.msra.mxu0 0.0
    %673 = vmatprep.subr.mxu0 0.0
    %674 = vmatpush1.msra.mxu0 0.0
    %675 = vmatprep.subr.mxu0 0.0
    %676 = vmatpush1.msra.mxu0 0.0
    %677 = vmatprep.subr.mxu0 0.0
    %678 = vmatpush1.msra.mxu0 0.0
    %679 = vmatprep.subr.mxu0 0.0
    %680 = vmatpush1.msra.mxu0 0.0
    %681 = vmatprep.subr.mxu0 0.0
    %682 = vmatpush1.msra.mxu0 0.0
    %683 = vmatprep.subr.mxu0 0.0
    %684 = vmatpush1.msra.mxu0 0.0
    %685 = vmatprep.subr.mxu0 0.0
    %686 = vmatpush1.msra.mxu0 0.0
    %687 = vmatprep.subr.mxu0 0.0
    %688 = vmatpush1.msra.mxu0 0.0
    %689 = vmatprep.subr.mxu0 0.0
    %690 = vmatpush1.msra.mxu0 0.0
    %691 = vmatprep.subr.mxu0 0.0
    %692 = vmatpush1.msra.mxu0 0.0
    %693 = vmatprep.subr.mxu0 0.0
    %694 = vmatpush1.msra.mxu0 0.0
    %695 = vmatprep.subr.mxu0 0.0
    %696 = vmatpush1.msra.mxu0 0.0
    %697 = vmatprep.subr.mxu0 0.0
    %698 = vmatpush1.msra.mxu0 0.0
    %699 = vmatprep.subr.mxu0 0.0
    %700 = vmatpush1.msra.mxu0 0.0
    %701 = vmatprep.subr.mxu0 0.0
    %702 = vmatpush1.msra.mxu0 0.0
    %703 = vmatprep.subr.mxu0 0.0
    %704 = vmatpush1.msra.mxu0 0.0
    %705 = vmatprep.subr.mxu0 0.0
    %706 = vmatpush1.msra.mxu0 0.0
    %707 = vmatprep.subr.mxu0 0.0
    %708 = vmatpush1.msra.mxu0 0.0
    %709 = vmatprep.subr.mxu0 0.0
    %710 = vmatpush1.msra.mxu0 0.0
    %711 = vmatprep.subr.mxu0 0.0
    %712 = vmatpush1.msra.mxu0 0.0
    %713 = vmatprep.subr.mxu0 0.0
    %714 = vmatpush1.msra.mxu0 0.0
    %715 = vmatprep.subr.mxu0 0.0
    %716 = vmatpush1.msra.mxu0 0.0
    %717 = vmatprep.mubr.f32.mxu0 0.0
    %718 = vmatmul.mubr.f32.gmra.mrb[0].mxu0 %v651
    %v719 = vpop.f32.mrb[0].mxu0
    %v720 = vadd.f32 0.0, %v719
    %v721 = vpop.f32.mrb[0].mxu0
    %722 = vdwg.mxu0
    %v723 = vadd.f32 %v132, %v720
    %v724 = vxor.u32 %v723, 2147483648
    %v725 = vmul.f32 %v724, 1.442695
    %v726 = vpow.pop %v725
    %v727 = vadd.f32 %v726, 1.0
    %v728 = vrcp.pop %v727
    %v729 = vmul.f32 1.0, %v728
    %v730 = vadd.f32 %v720, %v244
    %732 = vrot.lane.b32.xlu0 %v730, 64
    %v733 = vpop.permute.xlu0 %732
    %v735 = vmul.f32 %v729, %v733
    %737 = vrot.lane.b32.xlu0 %v735, 64
    %v738 = vpop.permute.xlu0 %737
    %v740 = vadd.f32 %v132, %v738
    %v741 = vtanh.pop %v740
    %v743 = vrot.slane %v741, 4
    %v745 = vsub.f32 %v633, %v743
    %v747 = vrot.slane %v745, 4
    %748 = vrot.lane.b32.xlu0 %v747, 96
    %v749 = vpop.permute.xlu0 %748
    %v751 = vmul.f32 %v729, %v749
    %753 = vrot.lane.b32.xlu0 %v751, 32
    %v754 = vpop.permute.xlu0 %753
    %v756 = vadd.f32 %v741, %v754
    %vm757 = vcmp.eq.s32.totalorder %v145, 4
    %v758 = vsel %vm757, 1, 0
    %759 = vset.pattern.permute.xlu0 0
    %760 = vperm.xlu0 %759, %v758
    %v761 = vpop.permute.xlu0 %760
    %vm762 = vcmp.eq.s32.totalorder %v761, 1
    %v763 = vsel %vm762, %v756, 0.0
    %v764 = vadd.f32 %v650, %v763
    %766 = vrot.lane.b32.xlu0 %v756, 64
    %v767 = vpop.permute.xlu0 %766
    %v768 = vsel %vm42, %v767, 0
    %770 = vmatprep.subr.mxu0 0.0
    %771 = vmatpush1.msra.mxu0 %v140
    %772 = vmatprep.subr.mxu0 0.0
    %773 = vmatpush1.msra.mxu0 %v141
    %774 = vmatprep.subr.mxu0 0.0
    %775 = vmatpush1.msra.mxu0 %v142
    %776 = vmatprep.subr.mxu0 0.0
    %777 = vmatpush1.msra.mxu0 %v143
    %778 = vmatprep.subr.mxu0 0.0
    %779 = vmatpush1.msra.mxu0 0.0
    %780 = vmatprep.subr.mxu0 0.0
    %781 = vmatpush1.msra.mxu0 0.0
    %782 = vmatprep.subr.mxu0 0.0
    %783 = vmatpush1.msra.mxu0 0.0
    %784 = vmatprep.subr.mxu0 0.0
    %785 = vmatpush1.msra.mxu0 0.0
    %786 = vmatprep.subr.mxu0 0.0
    %787 = vmatpush1.msra.mxu0 0.0
    %788 = vmatprep.subr.mxu0 0.0
    %789 = vmatpush1.msra.mxu0 0.0
    %790 = vmatprep.subr.mxu0 0.0
    %791 = vmatpush1.msra.mxu0 0.0
    %792 = vmatprep.subr.mxu0 0.0
    %793 = vmatpush1.msra.mxu0 0.0
    %794 = vmatprep.subr.mxu0 0.0
    %795 = vmatpush1.msra.mxu0 0.0
    %796 = vmatprep.subr.mxu0 0.0
    %797 = vmatpush1.msra.mxu0 0.0
    %798 = vmatprep.subr.mxu0 0.0
    %799 = vmatpush1.msra.mxu0 0.0
    %800 = vmatprep.subr.mxu0 0.0
    %801 = vmatpush1.msra.mxu0 0.0
    %802 = vmatprep.subr.mxu0 0.0
    %803 = vmatpush1.msra.mxu0 0.0
    %804 = vmatprep.subr.mxu0 0.0
    %805 = vmatpush1.msra.mxu0 0.0
    %806 = vmatprep.subr.mxu0 0.0
    %807 = vmatpush1.msra.mxu0 0.0
    %808 = vmatprep.subr.mxu0 0.0
    %809 = vmatpush1.msra.mxu0 0.0
    %810 = vmatprep.subr.mxu0 0.0
    %811 = vmatpush1.msra.mxu0 0.0
    %812 = vmatprep.subr.mxu0 0.0
    %813 = vmatpush1.msra.mxu0 0.0
    %814 = vmatprep.subr.mxu0 0.0
    %815 = vmatpush1.msra.mxu0 0.0
    %816 = vmatprep.subr.mxu0 0.0
    %817 = vmatpush1.msra.mxu0 0.0
    %818 = vmatprep.subr.mxu0 0.0
    %819 = vmatpush1.msra.mxu0 0.0
    %820 = vmatprep.subr.mxu0 0.0
    %821 = vmatpush1.msra.mxu0 0.0
    %822 = vmatprep.subr.mxu0 0.0
    %823 = vmatpush1.msra.mxu0 0.0
    %824 = vmatprep.subr.mxu0 0.0
    %825 = vmatpush1.msra.mxu0 0.0
    %826 = vmatprep.subr.mxu0 0.0
    %827 = vmatpush1.msra.mxu0 0.0
    %828 = vmatprep.subr.mxu0 0.0
    %829 = vmatpush1.msra.mxu0 0.0
    %830 = vmatprep.subr.mxu0 0.0
    %831 = vmatpush1.msra.mxu0 0.0
    %832 = vmatprep.subr.mxu0 0.0
    %833 = vmatpush1.msra.mxu0 0.0
    %834 = vmatprep.mubr.f32.mxu0 0.0
    %835 = vmatmul.mubr.f32.gmra.mrb[0].mxu0 %v768
    %v836 = vpop.f32.mrb[0].mxu0
    %v837 = vadd.f32 0.0, %v836
    %v838 = vpop.f32.mrb[0].mxu0
    %839 = vdwg.mxu0
    %v841 = vrot.slane %v837, 4
    %v843 = vadd.f32 %v132, %v841
    %v844 = vxor.u32 %v843, 2147483648
    %v845 = vmul.f32 %v844, 1.442695
    %v846 = vpow.pop %v845
    %v847 = vadd.f32 %v846, 1.0
    %v848 = vrcp.pop %v847
    %v849 = vmul.f32 1.0, %v848
    %v850 = vadd.f32 %v837, %v244
    %v852 = vrot.slane %v850, 4
    %853 = vrot.lane.b32.xlu0 %v852, 64
    %v854 = vpop.permute.xlu0 %853
    %v856 = vmul.f32 %v849, %v854
    %858 = vrot.lane.b32.xlu0 %v856, 64
    %v859 = vpop.permute.xlu0 %858
    %v861 = vadd.f32 %v132, %v859
    %v862 = vtanh.pop %v861
    %v864 = vrot.slane %v862, 4
    %v866 = vsub.f32 %v756, %v864
    %v868 = vrot.slane %v866, 4
    %869 = vrot.lane.b32.xlu0 %v868, 96
    %v870 = vpop.permute.xlu0 %869
    %v872 = vmul.f32 %v849, %v870
    %874 = vrot.lane.b32.xlu0 %v872, 32
    %v875 = vpop.permute.xlu0 %874
    %v877 = vadd.f32 %v862, %v875
    %vm878 = vcmp.eq.s32.totalorder %v145, 5
    %v879 = vsel %vm878, 1, 0
    %880 = vset.pattern.permute.xlu0 0
    %881 = vperm.xlu0 %880, %v879
    %v882 = vpop.permute.xlu0 %881
    %vm883 = vcmp.eq.s32.totalorder %v882, 1
    %v885 = vrot.slane %v877, 4
    %886 = vrot.lane.b32.xlu0 %v885, 64
    %v887 = vpop.permute.xlu0 %886
    %v889 = vsel %vm883, %v887, 0.0
    %891 = vrot.lane.b32.xlu0 %v889, 64
    %v892 = vpop.permute.xlu0 %891
    %v894 = vadd.f32 %v764, %v892
    %v895 = vsel %vm42, %v887, 0
    %897 = vmatprep.subr.mxu0 0.0
    %898 = vmatpush1.msra.mxu0 %v140
    %899 = vmatprep.subr.mxu0 0.0
    %900 = vmatpush1.msra.mxu0 %v141
    %901 = vmatprep.subr.mxu0 0.0
    %902 = vmatpush1.msra.mxu0 %v142
    %903 = vmatprep.subr.mxu0 0.0
    %904 = vmatpush1.msra.mxu0 %v143
    %905 = vmatprep.subr.mxu0 0.0
    %906 = vmatpush1.msra.mxu0 0.0
    %907 = vmatprep.subr.mxu0 0.0
    %908 = vmatpush1.msra.mxu0 0.0
    %909 = vmatprep.subr.mxu0 0.0
    %910 = vmatpush1.msra.mxu0 0.0
    %911 = vmatprep.subr.mxu0 0.0
    %912 = vmatpush1.msra.mxu0 0.0
    %913 = vmatprep.subr.mxu0 0.0
    %914 = vmatpush1.msra.mxu0 0.0
    %915 = vmatprep.subr.mxu0 0.0
    %916 = vmatpush1.msra.mxu0 0.0
    %917 = vmatprep.subr.mxu0 0.0
    %918 = vmatpush1.msra.mxu0 0.0
    %919 = vmatprep.subr.mxu0 0.0
    %920 = vmatpush1.msra.mxu0 0.0
    %921 = vmatprep.subr.mxu0 0.0
    %922 = vmatpush1.msra.mxu0 0.0
    %923 = vmatprep.subr.mxu0 0.0
    %924 = vmatpush1.msra.mxu0 0.0
    %925 = vmatprep.subr.mxu0 0.0
    %926 = vmatpush1.msra.mxu0 0.0
    %927 = vmatprep.subr.mxu0 0.0
    %928 = vmatpush1.msra.mxu0 0.0
    %929 = vmatprep.subr.mxu0 0.0
    %930 = vmatpush1.msra.mxu0 0.0
    %931 = vmatprep.subr.mxu0 0.0
    %932 = vmatpush1.msra.mxu0 0.0
    %933 = vmatprep.subr.mxu0 0.0
    %934 = vmatpush1.msra.mxu0 0.0
    %935 = vmatprep.subr.mxu0 0.0
    %936 = vmatpush1.msra.mxu0 0.0
    %937 = vmatprep.subr.mxu0 0.0
    %938 = vmatpush1.msra.mxu0 0.0
    %939 = vmatprep.subr.mxu0 0.0
    %940 = vmatpush1.msra.mxu0 0.0
    %941 = vmatprep.subr.mxu0 0.0
    %942 = vmatpush1.msra.mxu0 0.0
    %943 = vmatprep.subr.mxu0 0.0
    %944 = vmatpush1.msra.mxu0 0.0
    %945 = vmatprep.subr.mxu0 0.0
    %946 = vmatpush1.msra.mxu0 0.0
    %947 = vmatprep.subr.mxu0 0.0
    %948 = vmatpush1.msra.mxu0 0.0
    %949 = vmatprep.subr.mxu0 0.0
    %950 = vmatpush1.msra.mxu0 0.0
    %951 = vmatprep.subr.mxu0 0.0
    %952 = vmatpush1.msra.mxu0 0.0
    %953 = vmatprep.subr.mxu0 0.0
    %954 = vmatpush1.msra.mxu0 0.0
    %955 = vmatprep.subr.mxu0 0.0
    %956 = vmatpush1.msra.mxu0 0.0
    %957 = vmatprep.subr.mxu0 0.0
    %958 = vmatpush1.msra.mxu0 0.0
    %959 = vmatprep.subr.mxu0 0.0
    %960 = vmatpush1.msra.mxu0 0.0
    %961 = vmatprep.mubr.f32.mxu0 0.0
    %962 = vmatmul.mubr.f32.gmra.mrb[0].mxu0 %v895
    %v963 = vpop.f32.mrb[0].mxu0
    %v964 = vadd.f32 0.0, %v963
    %v965 = vpop.f32.mrb[0].mxu0
    %966 = vdwg.mxu0
    %v967 = vadd.f32 %v137, %v964
    %v968 = vxor.u32 %v967, 2147483648
    %v969 = vmul.f32 %v968, 1.442695
    %v970 = vpow.pop %v969
    %v971 = vadd.f32 %v970, 1.0
    %v972 = vrcp.pop %v971
    %v973 = vmul.f32 1.0, %v972
    %v974 = vadd.f32 %v964, %v244
    %976 = vrot.lane.b32.xlu0 %v974, 64
    %v977 = vpop.permute.xlu0 %976
    %v979 = vmul.f32 %v973, %v977
    %981 = vrot.lane.b32.xlu0 %v979, 64
    %v982 = vpop.permute.xlu0 %981
    %v984 = vadd.f32 %v137, %v982
    %v985 = vtanh.pop %v984
    %v987 = vrot.slane %v985, 4
    %v989 = vsub.f32 %v877, %v987
    %v991 = vrot.slane %v989, 4
    %992 = vrot.lane.b32.xlu0 %v991, 96
    %v993 = vpop.permute.xlu0 %992
    %v995 = vmul.f32 %v973, %v993
    %997 = vrot.lane.b32.xlu0 %v995, 32
    %v998 = vpop.permute.xlu0 %997
    %v1000 = vadd.f32 %v985, %v998
    %vm1001 = vcmp.eq.s32.totalorder %v145, 6
    %v1002 = vsel %vm1001, 1, 0
    %1003 = vset.pattern.permute.xlu0 0
    %1004 = vperm.xlu0 %1003, %v1002
    %v1005 = vpop.permute.xlu0 %1004
    %vm1006 = vcmp.eq.s32.totalorder %v1005, 1
    %v1007 = vsel %vm1006, %v1000, 0.0
    %v1008 = vadd.f32 %v894, %v1007
    %1010 = vrot.lane.b32.xlu0 %v1000, 64
    %v1011 = vpop.permute.xlu0 %1010
    %v1012 = vsel %vm42, %v1011, 0
    %1014 = vmatprep.subr.mxu0 0.0
    %1015 = vmatpush1.msra.mxu0 %v140
    %1016 = vmatprep.subr.mxu0 0.0
    %1017 = vmatpush1.msra.mxu0 %v141
    %1018 = vmatprep.subr.mxu0 0.0
    %1019 = vmatpush1.msra.mxu0 %v142
    %1020 = vmatprep.subr.mxu0 0.0
    %1021 = vmatpush1.msra.mxu0 %v143
    %1022 = vmatprep.subr.mxu0 0.0
    %1023 = vmatpush1.msra.mxu0 0.0
    %1024 = vmatprep.subr.mxu0 0.0
    %1025 = vmatpush1.msra.mxu0 0.0
    %1026 = vmatprep.subr.mxu0 0.0
    %1027 = vmatpush1.msra.mxu0 0.0
    %1028 = vmatprep.subr.mxu0 0.0
    %1029 = vmatpush1.msra.mxu0 0.0
    %1030 = vmatprep.subr.mxu0 0.0
    %1031 = vmatpush1.msra.mxu0 0.0
    %1032 = vmatprep.subr.mxu0 0.0
    %1033 = vmatpush1.msra.mxu0 0.0
    %1034 = vmatprep.subr.mxu0 0.0
    %1035 = vmatpush1.msra.mxu0 0.0
    %1036 = vmatprep.subr.mxu0 0.0
    %1037 = vmatpush1.msra.mxu0 0.0
    %1038 = vmatprep.subr.mxu0 0.0
    %1039 = vmatpush1.msra.mxu0 0.0
    %1040 = vmatprep.subr.mxu0 0.0
    %1041 = vmatpush1.msra.mxu0 0.0
    %1042 = vmatprep.subr.mxu0 0.0
    %1043 = vmatpush1.msra.mxu0 0.0
    %1044 = vmatprep.subr.mxu0 0.0
    %1045 = vmatpush1.msra.mxu0 0.0
    %1046 = vmatprep.subr.mxu0 0.0
    %1047 = vmatpush1.msra.mxu0 0.0
    %1048 = vmatprep.subr.mxu0 0.0
    %1049 = vmatpush1.msra.mxu0 0.0
    %1050 = vmatprep.subr.mxu0 0.0
    %1051 = vmatpush1.msra.mxu0 0.0
    %1052 = vmatprep.subr.mxu0 0.0
    %1053 = vmatpush1.msra.mxu0 0.0
    %1054 = vmatprep.subr.mxu0 0.0
    %1055 = vmatpush1.msra.mxu0 0.0
    %1056 = vmatprep.subr.mxu0 0.0
    %1057 = vmatpush1.msra.mxu0 0.0
    %1058 = vmatprep.subr.mxu0 0.0
    %1059 = vmatpush1.msra.mxu0 0.0
    %1060 = vmatprep.subr.mxu0 0.0
    %1061 = vmatpush1.msra.mxu0 0.0
    %1062 = vmatprep.subr.mxu0 0.0
    %1063 = vmatpush1.msra.mxu0 0.0
    %1064 = vmatprep.subr.mxu0 0.0
    %1065 = vmatpush1.msra.mxu0 0.0
    %1066 = vmatprep.subr.mxu0 0.0
    %1067 = vmatpush1.msra.mxu0 0.0
    %1068 = vmatprep.subr.mxu0 0.0
    %1069 = vmatpush1.msra.mxu0 0.0
    %1070 = vmatprep.subr.mxu0 0.0
    %1071 = vmatpush1.msra.mxu0 0.0
    %1072 = vmatprep.subr.mxu0 0.0
    %1073 = vmatpush1.msra.mxu0 0.0
    %1074 = vmatprep.subr.mxu0 0.0
    %1075 = vmatpush1.msra.mxu0 0.0
    %1076 = vmatprep.subr.mxu0 0.0
    %1077 = vmatpush1.msra.mxu0 0.0
    %1078 = vmatprep.mubr.f32.mxu0 0.0
    %1079 = vmatmul.mubr.f32.gmra.mrb[0].mxu0 %v1012
    %v1080 = vpop.f32.mrb[0].mxu0
    %v1081 = vadd.f32 0.0, %v1080
    %v1082 = vpop.f32.mrb[0].mxu0
    %1083 = vdwg.mxu0
    %v1085 = vrot.slane %v1081, 4
    %v1087 = vadd.f32 %v137, %v1085
    %v1088 = vxor.u32 %v1087, 2147483648
    %v1089 = vmul.f32 %v1088, 1.442695
    %v1090 = vpow.pop %v1089
    %v1091 = vadd.f32 %v1090, 1.0
    %v1092 = vrcp.pop %v1091
    %v1093 = vmul.f32 1.0, %v1092
    %v1094 = vadd.f32 %v1081, %v244
    %v1096 = vrot.slane %v1094, 4
    %1097 = vrot.lane.b32.xlu0 %v1096, 64
    %v1098 = vpop.permute.xlu0 %1097
    %v1100 = vmul.f32 %v1093, %v1098
    %1102 = vrot.lane.b32.xlu0 %v1100, 64
    %v1103 = vpop.permute.xlu0 %1102
    %v1105 = vadd.f32 %v137, %v1103
    %v1106 = vtanh.pop %v1105
    %v1108 = vrot.slane %v1106, 4
    %v1110 = vsub.f32 %v1000, %v1108
    %v1112 = vrot.slane %v1110, 4
    %1113 = vrot.lane.b32.xlu0 %v1112, 96
    %v1114 = vpop.permute.xlu0 %1113
    %v1116 = vmul.f32 %v1093, %v1114
    %1118 = vrot.lane.b32.xlu0 %v1116, 32
    %v1119 = vpop.permute.xlu0 %1118
    %v1121 = vadd.f32 %v1106, %v1119
    %vm1122 = vcmp.eq.s32.totalorder %v145, 7
    %v1123 = vsel %vm1122, 1, 0
    %1124 = vset.pattern.permute.xlu0 0
    %1125 = vperm.xlu0 %1124, %v1123
    %v1126 = vpop.permute.xlu0 %1125
    %vm1127 = vcmp.eq.s32.totalorder %v1126, 1
    %v1129 = vrot.slane %v1121, 4
    %1130 = vrot.lane.b32.xlu0 %v1129, 64
    %v1131 = vpop.permute.xlu0 %1130
    %v1133 = vsel %vm1127, %v1131, 0.0
    %1135 = vrot.lane.b32.xlu0 %v1133, 64
    %v1136 = vpop.permute.xlu0 %1135
    %v1138 = vadd.f32 %v1008, %v1136
    %v1139 = vmul.f32 %v1138, %v157
    %1141 = vrot.lane.b32.xlu0 %v1139, 64
    %v1142 = vpop.permute.xlu0 %1141
    %vm1144 = vcmask 257024
    %1145 = vst.msk [vmem:[#allocation2] sm:$0xf] %vm1144, %v1142
    // Predicated region
    $region30: #{catenn_forward.1} parent=1 // pred_check
      _
    $region31: #{catenn_forward.1} parent=1 // pred_check_branch
      %1147 = sbr.rel (0) target = $region33
    $region32: #{catenn_forward.1} parent=1 // pred_region
      %s1149 = ssub.s32 64, 64
      %1150 = vsyncadd [#allocation3], %s1149
      %s1152 = sshll.u32 [#allocation2], 4
      %s1153 = int_to_ptr.vmem [resolvable:$true] %s1152
      %1155 = dma.vmem_to_hbm [thread:$0]  %s1153, 64, %s7, [#allocation3]
    $region33: #{catenn_forward.1} parent=1 // pred_fallthru
      _
    // Predicated region
    $region34: #{catenn_forward.1} parent=1 // pred_check
      _
    $region35: #{catenn_forward.1} parent=1 // pred_check_branch
      %1157 = sbr.rel (0) target = $region37
    $region36: #{catenn_forward.1} parent=1 // pred_region
      %1158 = dma.done [#allocation3], 64
    $region37: #{catenn_forward.1} parent=1 // pred_fallthru
      _
    %1159 = vsyncpa [#allocation3], 1

</llo_original>
